<compile_context>
chip_gen: v7x
topology: tpu7x:2x2x1
jax: 0.10.0
libtpu: 0.0.40
codegen_flags: <defaults>
</compile_context>

<pallas_src>
import functools

import jax
import jax.numpy as jnp
from jax import lax
from jax.experimental import pallas as pl
from jax.experimental.pallas import tpu as pltpu


# Row order inside the packed per-layer vector block.
_BQ, _BK, _BV, _BO, _B1, _B2, _G1, _BETA1, _G2, _BETA2 = range(10)


def encoder_stack_kernel(x_ref, wq_ref, wk_ref, wv_ref, wo_ref,
                         w1_ref, w2_ref, vec_ref,
                         o_ref, attn_scr,
                         *, num_heads, batch_tile):
    # grid = (batch_tiles, layer); layer is the inner ("arbitrary") axis.
    layer = pl.program_id(1)

    # o_ref is the activation carry: its block index depends only on the batch
    # coordinate, so it stays resident in VMEM across the whole layer loop.
    @pl.when(layer == 0)
    def _init_carry():
        o_ref[...] = x_ref[...]

    bt = batch_tile
    _, S, D = x_ref.shape
    N = bt * S
    H = num_heads
    dk = D // H
    F = w1_ref.shape[-1]
    scale = 1.0 / (dk ** 0.5)

    x = o_ref[...].reshape(N, D)                       # f32 activation carry
    xb = x.astype(jnp.bfloat16)

    # Packed per-layer vectors: (10, Fmax) f32 -> (1, width) rows.
    vec = vec_ref[0]
    bq = vec[_BQ:_BQ + 1, :D]
    bk = vec[_BK:_BK + 1, :D]
    bv = vec[_BV:_BV + 1, :D]
    bo = vec[_BO:_BO + 1, :D]
    b1 = vec[_B1:_B1 + 1, :F]
    b2 = vec[_B2:_B2 + 1, :D]
    g1 = vec[_G1:_G1 + 1, :D]
    beta1 = vec[_BETA1:_BETA1 + 1, :D]
    g2 = vec[_G2:_G2 + 1, :D]
    beta2 = vec[_BETA2:_BETA2 + 1, :D]

    # ---- lane-dense Q/K/V projections: one (N, D) @ (D, D) MXU op each ----
    q = jnp.dot(xb, wq_ref[0], preferred_element_type=jnp.float32) + bq
    k = jnp.dot(xb, wk_ref[0], preferred_element_type=jnp.float32) + bk
    v = jnp.dot(xb, wv_ref[0], preferred_element_type=jnp.float32) + bv

    # ---- attention, processed per (batch element, head) -------------------
    # Only one (S, S) score tile is live at a time; per-head output projection
    # is folded in and accumulated into the VMEM (N, D) accumulator.
    attn_scr[...] = jnp.zeros_like(attn_scr)
    for b in range(bt):                                # static, bt is small
        r0 = b * S
        for h in range(H):                             # static lane offsets
            c0 = h * dk
            q_h = q[r0:r0 + S, c0:c0 + dk].astype(jnp.bfloat16)
            k_h = k[r0:r0 + S, c0:c0 + dk].astype(jnp.bfloat16)
            v_h = v[r0:r0 + S, c0:c0 + dk].astype(jnp.bfloat16)

            s = lax.dot_general(q_h, k_h, (((1,), (1,)), ((), ())),
                                preferred_element_type=jnp.float32) * scale
            m = jnp.max(s, axis=-1, keepdims=True)
            p = jnp.exp(s - m)
            denom = jnp.sum(p, axis=-1, keepdims=True)
            p = p * pl.reciprocal(denom, approx=True)  # EUP slot, ~free

            ctx = jnp.dot(p.astype(jnp.bfloat16), v_h,
                          preferred_element_type=jnp.float32)         # (S, dk)
            part = jnp.dot(ctx.astype(jnp.bfloat16), wo_ref[0, h],
                           preferred_element_type=jnp.float32)        # (S, D)
            attn_scr[r0:r0 + S, :] += part

    attn = attn_scr[...] + bo                          # (N, D) f32

    def layer_norm(val, g, b, eps=1e-5):
        # single-pass statistics: var = E[x^2] - E[x]^2
        mu = jnp.mean(val, axis=-1, keepdims=True)
        ms = jnp.mean(val * val, axis=-1, keepdims=True)
        var = ms - mu * mu
        return (val - mu) * lax.rsqrt(var + eps) * g + b

    x1 = layer_norm(x + attn, g1, beta1)

    # ---- position-wise feed-forward: Linear -> ReLU -> Linear --------------
    x1b = x1.astype(jnp.bfloat16)
    h1 = jnp.maximum(
        jnp.dot(x1b, w1_ref[0], preferred_element_type=jnp.float32) + b1, 0.0)
    ff = jnp.dot(h1.astype(jnp.bfloat16), w2_ref[0],
                 preferred_element_type=jnp.float32) + b2

    x2 = layer_norm(x1 + ff, g2, beta2)
    o_ref[...] = x2.reshape(o_ref.shape).astype(o_ref.dtype)


def _vmem_limit_bytes():
    """Generation-aware VMEM budget (v5e/v6e: 128 MiB, v7x: 64 MiB physical)."""
    try:
        cap = pltpu.get_tpu_info().vmem_capacity_bytes
    except Exception:
        cap = 64 * 1024 * 1024
    return min(int(cap * 0.8), 100 * 1024 * 1024)


def encoder_stack(x, stacked, num_heads, *, batch_tile=1):
    B, S, D = x.shape
    L = stacked['wq'].shape[0]
    F = stacked['w1'].shape[-1]
    fmax = stacked['vecs'].shape[-1]
    H = num_heads
    dk = D // H
    assert D % H == 0
    assert B % batch_tile == 0
    bt = batch_tile

    def act_spec():
        return pl.BlockSpec((bt, S, D), lambda b, l: (b, 0, 0))

    def wspec(tail):
        n = len(tail)
        return pl.BlockSpec((1,) + tail, lambda b, l, _n=n: (l,) + (0,) * _n)

    kernel = functools.partial(encoder_stack_kernel,
                               num_heads=H, batch_tile=bt)

    return pl.pallas_call(
        kernel,
        out_shape=jax.ShapeDtypeStruct((B, S, D), x.dtype),
        grid_spec=pltpu.PrefetchScalarGridSpec(
            num_scalar_prefetch=0,
            grid=(B // bt, L),                 # layer axis innermost (carry)
            in_specs=[
                act_spec(),
                wspec((D, D)), wspec((D, D)), wspec((D, D)),   # wq, wk, wv
                wspec((H, dk, D)),                              # wo (head-split rows)
                wspec((D, F)), wspec((F, D)),                   # w1, w2
                wspec((10, fmax)),                              # packed biases / LN params
            ],
            out_specs=act_spec(),
            scratch_shapes=[pltpu.VMEM((bt * S, D), jnp.float32)],
        ),
        compiler_params=pltpu.CompilerParams(
            dimension_semantics=("parallel", "arbitrary"),
            vmem_limit_bytes=_vmem_limit_bytes(),
        ),
    )(x,
      stacked['wq'], stacked['wk'], stacked['wv'], stacked['wo'],
      stacked['w1'], stacked['w2'], stacked['vecs'])


def init_layer_params(key, d_model, d_ff):
    ks = jax.random.split(key, 6)
    s_d = 1.0 / jnp.sqrt(jnp.float32(d_model))
    s_f = 1.0 / jnp.sqrt(jnp.float32(d_ff))

    def lin(k, din, dout, s):
        kw, kb = jax.random.split(k)
        return (jax.random.uniform(kw, (din, dout), jnp.float32, -s, s),
                jax.random.uniform(kb, (1, dout), jnp.float32, -s, s))

    wq, bq = lin(ks[0], d_model, d_model, s_d)
    wk, bk = lin(ks[1], d_model, d_model, s_d)
    wv, bv = lin(ks[2], d_model, d_model, s_d)
    wo, bo = lin(ks[3], d_model, d_model, s_d)
    w1, b1 = lin(ks[4], d_model, d_ff, s_d)
    w2, b2 = lin(ks[5], d_ff, d_model, s_f)
    return dict(
        wq=wq, bq=bq, wk=wk, bk=bk, wv=wv, bv=bv, wo=wo, bo=bo,
        w1=w1, b1=b1, w2=w2, b2=b2,
        g1=jnp.ones((1, d_model), jnp.float32),
        beta1=jnp.zeros((1, d_model), jnp.float32),
        g2=jnp.ones((1, d_model), jnp.float32),
        beta2=jnp.zeros((1, d_model), jnp.float32),
    )


def stack_layer_params(layer_params, num_heads):
    """Stack per-layer params with a leading L dim.

    Matmul weights are cast to bf16 (MXU operands / halved weight DMA); the ten
    small per-layer vectors are packed into one (L, 10, max(D, F)) f32 array.
    W_o is stored head-split (L, H, dk, D) so the kernel indexes it by head on
    the leading dim (no lane slicing of weights).
    """
    L = len(layer_params)
    d_model = layer_params[0]['wq'].shape[0]
    d_ff = layer_params[0]['w1'].shape[1]
    dk = d_model // num_heads
    fmax = max(d_model, d_ff)

    def stack(name):
        return jnp.stack([p[name] for p in layer_params], axis=0)

    def pad_row(v):
        return jnp.pad(v, ((0, 0), (0, fmax - v.shape[-1])))

    vec_names = ('bq', 'bk', 'bv', 'bo', 'b1', 'b2', 'g1', 'beta1', 'g2', 'beta2')
    vecs = jnp.stack(
        [jnp.concatenate([pad_row(p[n]) for n in vec_names], axis=0)
         for p in layer_params], axis=0).astype(jnp.float32)        # (L, 10, fmax)

    out = {n: stack(n).astype(jnp.bfloat16)
           for n in ('wq', 'wk', 'wv', 'w1', 'w2')}
    out['wo'] = stack('wo').reshape(L, num_heads, dk, d_model).astype(jnp.bfloat16)
    out['vecs'] = vecs
    return out


def encoder_stack_reference(x, layer_params, num_heads):
    """Pure-JAX f32 reference matching the PyTorch module (inference mode)."""
    def layer_norm(v, g, b, eps=1e-5):
        mu = jnp.mean(v, axis=-1, keepdims=True)
        var = jnp.mean(jnp.square(v - mu), axis=-1, keepdims=True)
        return (v - mu) * lax.rsqrt(var + eps) * g + b

    B, S, D = x.shape
    H = num_heads
    dk = D // H
    for p in layer_params:
        q = x @ p['wq'] + p['bq']
        k = x @ p['wk'] + p['bk']
        v = x @ p['wv'] + p['bv']

        def split(t):
            return t.reshape(B, S, H, dk).transpose(0, 2, 1, 3)    # (B,H,S,dk)

        s = jnp.einsum('bhqd,bhkd->bhqk', split(q), split(k)) / (dk ** 0.5)
        a = jax.nn.softmax(s, axis=-1)
        ctx = jnp.einsum('bhqk,bhkd->bhqd', a, split(v))
        ctx = ctx.transpose(0, 2, 1, 3).reshape(B, S, D)
        attn = ctx @ p['wo'] + p['bo']
        x1 = layer_norm(x + attn, p['g1'], p['beta1'])
        ff = jnp.maximum(x1 @ p['w1'] + p['b1'], 0.0) @ p['w2'] + p['b2']
        x = layer_norm(x1 + ff, p['g2'], p['beta2'])
    return x


if __name__ == "__main__":
    num_layers, d_model, num_heads, d_ff = 2, 32, 4, 64
    batch, seq_len = 2, 8

    root = jax.random.PRNGKey(0)
    kx, kp = jax.random.split(root)
    x = jax.random.normal(kx, (batch, seq_len, d_model), jnp.float32)
    layer_keys = jax.random.split(kp, num_layers)
    layer_params = [init_layer_params(k, d_model, d_ff) for k in layer_keys]
    stacked = stack_layer_params(layer_params, num_heads)

    out = encoder_stack(x, stacked, num_heads, batch_tile=1)
    out = jax.block_until_ready(out)

    assert out.shape == (batch, seq_len, d_model)
    assert bool(jnp.all(jnp.isfinite(out)))

    ref = encoder_stack_reference(x, layer_params, num_heads)
    err = float(jnp.max(jnp.abs(out - ref)))
    # bf16 MXU operands with f32 accumulation: expect ~1e-2 max abs error here.
    assert err < 1e-1, f"max abs error vs reference: {err}"
    print("KERNEL_OK")
</pallas_src>

<mosaic_0001>
module attributes {stable_mosaic.version = 11 : i64} {
  func.func @encoder_stack_kernel(%arg0: i32, %arg1: i32, %arg2: memref<1x8x32xf32, #tpu.memory_space<vmem>>, %arg3: memref<1x32x32xbf16, #tpu.memory_space<vmem>>, %arg4: memref<1x32x32xbf16, #tpu.memory_space<vmem>>, %arg5: memref<1x32x32xbf16, #tpu.memory_space<vmem>>, %arg6: memref<1x4x8x32xbf16, #tpu.memory_space<vmem>>, %arg7: memref<1x32x64xbf16, #tpu.memory_space<vmem>>, %arg8: memref<1x64x32xbf16, #tpu.memory_space<vmem>>, %arg9: memref<1x10x64xf32, #tpu.memory_space<vmem>>, %arg10: memref<1x8x32xf32, #tpu.memory_space<vmem>>, %arg11: memref<8x32xf32, #tpu.memory_space<vmem>>) attributes {dimension_semantics = [#tpu.dimension_semantics<parallel>, #tpu.dimension_semantics<arbitrary>], iteration_bounds = array<i64: 2, 2>, scalar_prefetch = 0 : i64, scratch_operands = 1 : i64, tpu.core_type = #tpu.core_type<tc>, window_params = [{transform_indices = @transform_0, window_bounds = array<i64: 1, 8, 32>}, {transform_indices = @transform_1, window_bounds = array<i64: 1, 32, 32>}, {transform_indices = @transform_2, window_bounds = array<i64: 1, 32, 32>}, {transform_indices = @transform_3, window_bounds = array<i64: 1, 32, 32>}, {transform_indices = @transform_4, window_bounds = array<i64: 1, 4, 8, 32>}, {transform_indices = @transform_5, window_bounds = array<i64: 1, 32, 64>}, {transform_indices = @transform_6, window_bounds = array<i64: 1, 64, 32>}, {transform_indices = @transform_7, window_bounds = array<i64: 1, 10, 64>}, {transform_indices = @transform_8, window_bounds = array<i64: 1, 8, 32>}]} {
    %c0_i32 = arith.constant 0 : i32
    %0 = arith.cmpi eq, %arg1, %c0_i32 : i32
    %1 = arith.extui %0 : i1 to i32
    %c0_i32_0 = arith.constant 0 : i32
    %2 = arith.cmpi ne, %1, %c0_i32_0 : i32
    scf.if %2 {
      %c0_97 = arith.constant 0 : index
      %c0_98 = arith.constant 0 : index
      %c0_99 = arith.constant 0 : index
      %212 = vector.load %arg2[%c0_97, %c0_98, %c0_99] : memref<1x8x32xf32, #tpu.memory_space<vmem>>, vector<1x8x32xf32>
      %c0_100 = arith.constant 0 : index
      %c0_101 = arith.constant 0 : index
      %c0_102 = arith.constant 0 : index
      %213 = vector.load %arg10[%c0_100, %c0_101, %c0_102] : memref<1x8x32xf32, #tpu.memory_space<vmem>>, vector<1x8x32xf32>
      tpu.vector_store %arg10[%c0_100, %c0_101, %c0_102], %212 {strides = array<i32>} : memref<1x8x32xf32, #tpu.memory_space<vmem>>, vector<1x8x32xf32>,
    } else {
    }
    %c0 = arith.constant 0 : index
    %c0_1 = arith.constant 0 : index
    %c0_2 = arith.constant 0 : index
    %3 = vector.load %arg10[%c0, %c0_1, %c0_2] : memref<1x8x32xf32, #tpu.memory_space<vmem>>, vector<1x8x32xf32>
    %4 = vector.shape_cast %3 : vector<1x8x32xf32> to vector<8x32xf32>
    %5 = arith.truncf %4 : vector<8x32xf32> to vector<8x32xbf16>
    %c0_3 = arith.constant 0 : index
    %c0_4 = arith.constant 0 : index
    %c0_5 = arith.constant 0 : index
    %6 = vector.load %arg9[%c0_3, %c0_4, %c0_5] : memref<1x10x64xf32, #tpu.memory_space<vmem>>, vector<1x10x64xf32>
    %7 = vector.shape_cast %6 : vector<1x10x64xf32> to vector<10x64xf32>
    %8 = vector.extract_strided_slice %7 {offsets = [0, 0], sizes = [1, 32], strides = [1, 1]} : vector<10x64xf32> to vector<1x32xf32>
    %9 = vector.extract_strided_slice %7 {offsets = [1, 0], sizes = [1, 32], strides = [1, 1]} : vector<10x64xf32> to vector<1x32xf32>
    %10 = vector.extract_strided_slice %7 {offsets = [2, 0], sizes = [1, 32], strides = [1, 1]} : vector<10x64xf32> to vector<1x32xf32>
    %11 = vector.extract_strided_slice %7 {offsets = [3, 0], sizes = [1, 32], strides = [1, 1]} : vector<10x64xf32> to vector<1x32xf32>
    %12 = vector.extract_strided_slice %7 {offsets = [4, 0], sizes = [1, 64], strides = [1, 1]} : vector<10x64xf32> to vector<1x64xf32>
    %13 = vector.extract_strided_slice %7 {offsets = [5, 0], sizes = [1, 32], strides = [1, 1]} : vector<10x64xf32> to vector<1x32xf32>
    %14 = vector.extract_strided_slice %7 {offsets = [6, 0], sizes = [1, 32], strides = [1, 1]} : vector<10x64xf32> to vector<1x32xf32>
    %15 = vector.extract_strided_slice %7 {offsets = [7, 0], sizes = [1, 32], strides = [1, 1]} : vector<10x64xf32> to vector<1x32xf32>
    %16 = vector.extract_strided_slice %7 {offsets = [8, 0], sizes = [1, 32], strides = [1, 1]} : vector<10x64xf32> to vector<1x32xf32>
    %17 = vector.extract_strided_slice %7 {offsets = [9, 0], sizes = [1, 32], strides = [1, 1]} : vector<10x64xf32> to vector<1x32xf32>
    %c0_6 = arith.constant 0 : index
    %c0_7 = arith.constant 0 : index
    %c0_8 = arith.constant 0 : index
    %18 = vector.load %arg3[%c0_6, %c0_7, %c0_8] : memref<1x32x32xbf16, #tpu.memory_space<vmem>>, vector<1x32x32xbf16>
    %19 = vector.shape_cast %18 : vector<1x32x32xbf16> to vector<32x32xbf16>
    %cst = arith.constant dense<0.000000e+00> : vector<8x32xf32>
    %20 = tpu.matmul %5, %19, %cst {dimension_numbers = #tpu.dot_dimension_numbers<[1], [0], [0], [1], [0, 0, 1, 1], [], []>} : vector<8x32xbf16>, vector<32x32xbf16>, vector<8x32xf32> -> vector<8x32xf32>
    %21 = vector.broadcast %8 : vector<1x32xf32> to vector<8x32xf32>
    %22 = arith.addf %20, %21 : vector<8x32xf32>
    %c0_9 = arith.constant 0 : index
    %c0_10 = arith.constant 0 : index
    %c0_11 = arith.constant 0 : index
    %23 = vector.load %arg4[%c0_9, %c0_10, %c0_11] : memref<1x32x32xbf16, #tpu.memory_space<vmem>>, vector<1x32x32xbf16>
    %24 = vector.shape_cast %23 : vector<1x32x32xbf16> to vector<32x32xbf16>
    %cst_12 = arith.constant dense<0.000000e+00> : vector<8x32xf32>
    %25 = tpu.matmul %5, %24, %cst_12 {dimension_numbers = #tpu.dot_dimension_numbers<[1], [0], [0], [1], [0, 0, 1, 1], [], []>} : vector<8x32xbf16>, vector<32x32xbf16>, vector<8x32xf32> -> vector<8x32xf32>
    %26 = vector.broadcast %9 : vector<1x32xf32> to vector<8x32xf32>
    %27 = arith.addf %25, %26 : vector<8x32xf32>
    %c0_13 = arith.constant 0 : index
    %c0_14 = arith.constant 0 : index
    %c0_15 = arith.constant 0 : index
    %28 = vector.load %arg5[%c0_13, %c0_14, %c0_15] : memref<1x32x32xbf16, #tpu.memory_space<vmem>>, vector<1x32x32xbf16>
    %29 = vector.shape_cast %28 : vector<1x32x32xbf16> to vector<32x32xbf16>
    %cst_16 = arith.constant dense<0.000000e+00> : vector<8x32xf32>
    %30 = tpu.matmul %5, %29, %cst_16 {dimension_numbers = #tpu.dot_dimension_numbers<[1], [0], [0], [1], [0, 0, 1, 1], [], []>} : vector<8x32xbf16>, vector<32x32xbf16>, vector<8x32xf32> -> vector<8x32xf32>
    %31 = vector.broadcast %10 : vector<1x32xf32> to vector<8x32xf32>
    %32 = arith.addf %30, %31 : vector<8x32xf32>
    %cst_17 = arith.constant 0.000000e+00 : f32
    %33 = vector.broadcast %cst_17 : f32 to vector<8x32xf32>
    %c0_18 = arith.constant 0 : index
    %c0_19 = arith.constant 0 : index
    %34 = vector.load %arg11[%c0_18, %c0_19] : memref<8x32xf32, #tpu.memory_space<vmem>>, vector<8x32xf32>
    tpu.vector_store %arg11[%c0_18, %c0_19], %33 {strides = array<i32>} : memref<8x32xf32, #tpu.memory_space<vmem>>, vector<8x32xf32>,
    %35 = vector.extract_strided_slice %22 {offsets = [0, 0], sizes = [8, 8], strides = [1, 1]} : vector<8x32xf32> to vector<8x8xf32>
    %36 = arith.truncf %35 : vector<8x8xf32> to vector<8x8xbf16>
    %37 = vector.extract_strided_slice %27 {offsets = [0, 0], sizes = [8, 8], strides = [1, 1]} : vector<8x32xf32> to vector<8x8xf32>
    %38 = arith.truncf %37 : vector<8x8xf32> to vector<8x8xbf16>
    %39 = vector.extract_strided_slice %32 {offsets = [0, 0], sizes = [8, 8], strides = [1, 1]} : vector<8x32xf32> to vector<8x8xf32>
    %40 = arith.truncf %39 : vector<8x8xf32> to vector<8x8xbf16>
    %cst_20 = arith.constant dense<0.000000e+00> : vector<8x8xf32>
    %41 = tpu.matmul %36, %38, %cst_20 {dimension_numbers = #tpu.dot_dimension_numbers<[1], [1], [0], [0], [0, 0, 1, 0], [], []>} : vector<8x8xbf16>, vector<8x8xbf16>, vector<8x8xf32> -> vector<8x8xf32>
    %cst_21 = arith.constant 0.353553385 : f32
    %42 = vector.broadcast %cst_21 : f32 to vector<8x8xf32>
    %43 = arith.mulf %41, %42 : vector<8x8xf32>
    %cst_22 = arith.constant dense<0xFF800000> : vector<8xf32>
    %44 = vector.multi_reduction <maximumf>, %43, %cst_22 [1] : vector<8x8xf32> to vector<8xf32>
    %45 = vector.shape_cast %44 : vector<8xf32> to vector<8x1xf32>
    %46 = vector.broadcast %45 : vector<8x1xf32> to vector<8x8xf32>
    %47 = arith.subf %43, %46 : vector<8x8xf32>
    %48 = math.exp %47 : vector<8x8xf32>
    %cst_23 = arith.constant dense<0.000000e+00> : vector<8xf32>
    %49 = vector.multi_reduction <add>, %48, %cst_23 [1] : vector<8x8xf32> to vector<8xf32>
    %50 = vector.shape_cast %49 : vector<8xf32> to vector<8x1xf32>
    %51 = tpu.reciprocal %50 {approx = true} : vector<8x1xf32> -> vector<8x1xf32>
    %52 = vector.broadcast %51 : vector<8x1xf32> to vector<8x8xf32>
    %53 = arith.mulf %48, %52 : vector<8x8xf32>
    %54 = arith.truncf %53 : vector<8x8xf32> to vector<8x8xbf16>
    %cst_24 = arith.constant dense<0.000000e+00> : vector<8x8xf32>
    %55 = tpu.matmul %54, %40, %cst_24 {dimension_numbers = #tpu.dot_dimension_numbers<[1], [0], [0], [1], [0, 0, 1, 1], [], []>} : vector<8x8xbf16>, vector<8x8xbf16>, vector<8x8xf32> -> vector<8x8xf32>
    %56 = arith.truncf %55 : vector<8x8xf32> to vector<8x8xbf16>
    %c0_25 = arith.constant 0 : index
    %c0_26 = arith.constant 0 : index
    %c0_27 = arith.constant 0 : index
    %c0_28 = arith.constant 0 : index
    %57 = vector.load %arg6[%c0_25, %c0_26, %c0_27, %c0_28] : memref<1x4x8x32xbf16, #tpu.memory_space<vmem>>, vector<1x1x8x32xbf16>
    %58 = vector.shape_cast %57 : vector<1x1x8x32xbf16> to vector<8x32xbf16>
    %cst_29 = arith.constant dense<0.000000e+00> : vector<8x32xf32>
    %59 = tpu.matmul %56, %58, %cst_29 {dimension_numbers = #tpu.dot_dimension_numbers<[1], [0], [0], [1], [0, 0, 1, 1], [], []>} : vector<8x8xbf16>, vector<8x32xbf16>, vector<8x32xf32> -> vector<8x32xf32>
    %c0_30 = arith.constant 0 : index
    %c0_31 = arith.constant 0 : index
    %60 = vector.load %arg11[%c0_30, %c0_31] : memref<8x32xf32, #tpu.memory_space<vmem>>, vector<8x32xf32>
    %61 = arith.addf %60, %59 : vector<8x32xf32>
    %c0_32 = arith.constant 0 : index
    %c0_33 = arith.constant 0 : index
    %62 = vector.load %arg11[%c0_32, %c0_33] : memref<8x32xf32, #tpu.memory_space<vmem>>, vector<8x32xf32>
    tpu.vector_store %arg11[%c0_32, %c0_33], %61 {strides = array<i32>} : memref<8x32xf32, #tpu.memory_space<vmem>>, vector<8x32xf32>,
    %63 = vector.extract_strided_slice %22 {offsets = [0, 8], sizes = [8, 8], strides = [1, 1]} : vector<8x32xf32> to vector<8x8xf32>
    %64 = arith.truncf %63 : vector<8x8xf32> to vector<8x8xbf16>
    %65 = vector.extract_strided_slice %27 {offsets = [0, 8], sizes = [8, 8], strides = [1, 1]} : vector<8x32xf32> to vector<8x8xf32>
    %66 = arith.truncf %65 : vector<8x8xf32> to vector<8x8xbf16>
    %67 = vector.extract_strided_slice %32 {offsets = [0, 8], sizes = [8, 8], strides = [1, 1]} : vector<8x32xf32> to vector<8x8xf32>
    %68 = arith.truncf %67 : vector<8x8xf32> to vector<8x8xbf16>
    %cst_34 = arith.constant dense<0.000000e+00> : vector<8x8xf32>
    %69 = tpu.matmul %64, %66, %cst_34 {dimension_numbers = #tpu.dot_dimension_numbers<[1], [1], [0], [0], [0, 0, 1, 0], [], []>} : vector<8x8xbf16>, vector<8x8xbf16>, vector<8x8xf32> -> vector<8x8xf32>
    %cst_35 = arith.constant 0.353553385 : f32
    %70 = vector.broadcast %cst_35 : f32 to vector<8x8xf32>
    %71 = arith.mulf %69, %70 : vector<8x8xf32>
    %cst_36 = arith.constant dense<0xFF800000> : vector<8xf32>
    %72 = vector.multi_reduction <maximumf>, %71, %cst_36 [1] : vector<8x8xf32> to vector<8xf32>
    %73 = vector.shape_cast %72 : vector<8xf32> to vector<8x1xf32>
    %74 = vector.broadcast %73 : vector<8x1xf32> to vector<8x8xf32>
    %75 = arith.subf %71, %74 : vector<8x8xf32>
    %76 = math.exp %75 : vector<8x8xf32>
    %cst_37 = arith.constant dense<0.000000e+00> : vector<8xf32>
    %77 = vector.multi_reduction <add>, %76, %cst_37 [1] : vector<8x8xf32> to vector<8xf32>
    %78 = vector.shape_cast %77 : vector<8xf32> to vector<8x1xf32>
    %79 = tpu.reciprocal %78 {approx = true} : vector<8x1xf32> -> vector<8x1xf32>
    %80 = vector.broadcast %79 : vector<8x1xf32> to vector<8x8xf32>
    %81 = arith.mulf %76, %80 : vector<8x8xf32>
    %82 = arith.truncf %81 : vector<8x8xf32> to vector<8x8xbf16>
    %cst_38 = arith.constant dense<0.000000e+00> : vector<8x8xf32>
    %83 = tpu.matmul %82, %68, %cst_38 {dimension_numbers = #tpu.dot_dimension_numbers<[1], [0], [0], [1], [0, 0, 1, 1], [], []>} : vector<8x8xbf16>, vector<8x8xbf16>, vector<8x8xf32> -> vector<8x8xf32>
    %84 = arith.truncf %83 : vector<8x8xf32> to vector<8x8xbf16>
    %c0_39 = arith.constant 0 : index
    %c1 = arith.constant 1 : index
    %c0_40 = arith.constant 0 : index
    %c0_41 = arith.constant 0 : index
    %85 = vector.load %arg6[%c0_39, %c1, %c0_40, %c0_41] : memref<1x4x8x32xbf16, #tpu.memory_space<vmem>>, vector<1x1x8x32xbf16>
    %86 = vector.shape_cast %85 : vector<1x1x8x32xbf16> to vector<8x32xbf16>
    %cst_42 = arith.constant dense<0.000000e+00> : vector<8x32xf32>
    %87 = tpu.matmul %84, %86, %cst_42 {dimension_numbers = #tpu.dot_dimension_numbers<[1], [0], [0], [1], [0, 0, 1, 1], [], []>} : vector<8x8xbf16>, vector<8x32xbf16>, vector<8x32xf32> -> vector<8x32xf32>
    %c0_43 = arith.constant 0 : index
    %c0_44 = arith.constant 0 : index
    %88 = vector.load %arg11[%c0_43, %c0_44] : memref<8x32xf32, #tpu.memory_space<vmem>>, vector<8x32xf32>
    %89 = arith.addf %88, %87 : vector<8x32xf32>
    %c0_45 = arith.constant 0 : index
    %c0_46 = arith.constant 0 : index
    %90 = vector.load %arg11[%c0_45, %c0_46] : memref<8x32xf32, #tpu.memory_space<vmem>>, vector<8x32xf32>
    tpu.vector_store %arg11[%c0_45, %c0_46], %89 {strides = array<i32>} : memref<8x32xf32, #tpu.memory_space<vmem>>, vector<8x32xf32>,
    %91 = vector.extract_strided_slice %22 {offsets = [0, 16], sizes = [8, 8], strides = [1, 1]} : vector<8x32xf32> to vector<8x8xf32>
    %92 = arith.truncf %91 : vector<8x8xf32> to vector<8x8xbf16>
    %93 = vector.extract_strided_slice %27 {offsets = [0, 16], sizes = [8, 8], strides = [1, 1]} : vector<8x32xf32> to vector<8x8xf32>
    %94 = arith.truncf %93 : vector<8x8xf32> to vector<8x8xbf16>
    %95 = vector.extract_strided_slice %32 {offsets = [0, 16], sizes = [8, 8], strides = [1, 1]} : vector<8x32xf32> to vector<8x8xf32>
    %96 = arith.truncf %95 : vector<8x8xf32> to vector<8x8xbf16>
    %cst_47 = arith.constant dense<0.000000e+00> : vector<8x8xf32>
    %97 = tpu.matmul %92, %94, %cst_47 {dimension_numbers = #tpu.dot_dimension_numbers<[1], [1], [0], [0], [0, 0, 1, 0], [], []>} : vector<8x8xbf16>, vector<8x8xbf16>, vector<8x8xf32> -> vector<8x8xf32>
    %cst_48 = arith.constant 0.353553385 : f32
    %98 = vector.broadcast %cst_48 : f32 to vector<8x8xf32>
    %99 = arith.mulf %97, %98 : vector<8x8xf32>
    %cst_49 = arith.constant dense<0xFF800000> : vector<8xf32>
    %100 = vector.multi_reduction <maximumf>, %99, %cst_49 [1] : vector<8x8xf32> to vector<8xf32>
    %101 = vector.shape_cast %100 : vector<8xf32> to vector<8x1xf32>
    %102 = vector.broadcast %101 : vector<8x1xf32> to vector<8x8xf32>
    %103 = arith.subf %99, %102 : vector<8x8xf32>
    %104 = math.exp %103 : vector<8x8xf32>
    %cst_50 = arith.constant dense<0.000000e+00> : vector<8xf32>
    %105 = vector.multi_reduction <add>, %104, %cst_50 [1] : vector<8x8xf32> to vector<8xf32>
    %106 = vector.shape_cast %105 : vector<8xf32> to vector<8x1xf32>
    %107 = tpu.reciprocal %106 {approx = true} : vector<8x1xf32> -> vector<8x1xf32>
    %108 = vector.broadcast %107 : vector<8x1xf32> to vector<8x8xf32>
    %109 = arith.mulf %104, %108 : vector<8x8xf32>
    %110 = arith.truncf %109 : vector<8x8xf32> to vector<8x8xbf16>
    %cst_51 = arith.constant dense<0.000000e+00> : vector<8x8xf32>
    %111 = tpu.matmul %110, %96, %cst_51 {dimension_numbers = #tpu.dot_dimension_numbers<[1], [0], [0], [1], [0, 0, 1, 1], [], []>} : vector<8x8xbf16>, vector<8x8xbf16>, vector<8x8xf32> -> vector<8x8xf32>
    %112 = arith.truncf %111 : vector<8x8xf32> to vector<8x8xbf16>
    %c0_52 = arith.constant 0 : index
    %c2 = arith.constant 2 : index
    %c0_53 = arith.constant 0 : index
    %c0_54 = arith.constant 0 : index
    %113 = vector.load %arg6[%c0_52, %c2, %c0_53, %c0_54] : memref<1x4x8x32xbf16, #tpu.memory_space<vmem>>, vector<1x1x8x32xbf16>
    %114 = vector.shape_cast %113 : vector<1x1x8x32xbf16> to vector<8x32xbf16>
    %cst_55 = arith.constant dense<0.000000e+00> : vector<8x32xf32>
    %115 = tpu.matmul %112, %114, %cst_55 {dimension_numbers = #tpu.dot_dimension_numbers<[1], [0], [0], [1], [0, 0, 1, 1], [], []>} : vector<8x8xbf16>, vector<8x32xbf16>, vector<8x32xf32> -> vector<8x32xf32>
    %c0_56 = arith.constant 0 : index
    %c0_57 = arith.constant 0 : index
    %116 = vector.load %arg11[%c0_56, %c0_57] : memref<8x32xf32, #tpu.memory_space<vmem>>, vector<8x32xf32>
    %117 = arith.addf %116, %115 : vector<8x32xf32>
    %c0_58 = arith.constant 0 : index
    %c0_59 = arith.constant 0 : index
    %118 = vector.load %arg11[%c0_58, %c0_59] : memref<8x32xf32, #tpu.memory_space<vmem>>, vector<8x32xf32>
    tpu.vector_store %arg11[%c0_58, %c0_59], %117 {strides = array<i32>} : memref<8x32xf32, #tpu.memory_space<vmem>>, vector<8x32xf32>,
    %119 = vector.extract_strided_slice %22 {offsets = [0, 24], sizes = [8, 8], strides = [1, 1]} : vector<8x32xf32> to vector<8x8xf32>
    %120 = arith.truncf %119 : vector<8x8xf32> to vector<8x8xbf16>
    %121 = vector.extract_strided_slice %27 {offsets = [0, 24], sizes = [8, 8], strides = [1, 1]} : vector<8x32xf32> to vector<8x8xf32>
    %122 = arith.truncf %121 : vector<8x8xf32> to vector<8x8xbf16>
    %123 = vector.extract_strided_slice %32 {offsets = [0, 24], sizes = [8, 8], strides = [1, 1]} : vector<8x32xf32> to vector<8x8xf32>
    %124 = arith.truncf %123 : vector<8x8xf32> to vector<8x8xbf16>
    %cst_60 = arith.constant dense<0.000000e+00> : vector<8x8xf32>
    %125 = tpu.matmul %120, %122, %cst_60 {dimension_numbers = #tpu.dot_dimension_numbers<[1], [1], [0], [0], [0, 0, 1, 0], [], []>} : vector<8x8xbf16>, vector<8x8xbf16>, vector<8x8xf32> -> vector<8x8xf32>
    %cst_61 = arith.constant 0.353553385 : f32
    %126 = vector.broadcast %cst_61 : f32 to vector<8x8xf32>
    %127 = arith.mulf %125, %126 : vector<8x8xf32>
    %cst_62 = arith.constant dense<0xFF800000> : vector<8xf32>
    %128 = vector.multi_reduction <maximumf>, %127, %cst_62 [1] : vector<8x8xf32> to vector<8xf32>
    %129 = vector.shape_cast %128 : vector<8xf32> to vector<8x1xf32>
    %130 = vector.broadcast %129 : vector<8x1xf32> to vector<8x8xf32>
    %131 = arith.subf %127, %130 : vector<8x8xf32>
    %132 = math.exp %131 : vector<8x8xf32>
    %cst_63 = arith.constant dense<0.000000e+00> : vector<8xf32>
    %133 = vector.multi_reduction <add>, %132, %cst_63 [1] : vector<8x8xf32> to vector<8xf32>
    %134 = vector.shape_cast %133 : vector<8xf32> to vector<8x1xf32>
    %135 = tpu.reciprocal %134 {approx = true} : vector<8x1xf32> -> vector<8x1xf32>
    %136 = vector.broadcast %135 : vector<8x1xf32> to vector<8x8xf32>
    %137 = arith.mulf %132, %136 : vector<8x8xf32>
    %138 = arith.truncf %137 : vector<8x8xf32> to vector<8x8xbf16>
    %cst_64 = arith.constant dense<0.000000e+00> : vector<8x8xf32>
    %139 = tpu.matmul %138, %124, %cst_64 {dimension_numbers = #tpu.dot_dimension_numbers<[1], [0], [0], [1], [0, 0, 1, 1], [], []>} : vector<8x8xbf16>, vector<8x8xbf16>, vector<8x8xf32> -> vector<8x8xf32>
    %140 = arith.truncf %139 : vector<8x8xf32> to vector<8x8xbf16>
    %c0_65 = arith.constant 0 : index
    %c3 = arith.constant 3 : index
    %c0_66 = arith.constant 0 : index
    %c0_67 = arith.constant 0 : index
    %141 = vector.load %arg6[%c0_65, %c3, %c0_66, %c0_67] : memref<1x4x8x32xbf16, #tpu.memory_space<vmem>>, vector<1x1x8x32xbf16>
    %142 = vector.shape_cast %141 : vector<1x1x8x32xbf16> to vector<8x32xbf16>
    %cst_68 = arith.constant dense<0.000000e+00> : vector<8x32xf32>
    %143 = tpu.matmul %140, %142, %cst_68 {dimension_numbers = #tpu.dot_dimension_numbers<[1], [0], [0], [1], [0, 0, 1, 1], [], []>} : vector<8x8xbf16>, vector<8x32xbf16>, vector<8x32xf32> -> vector<8x32xf32>
    %c0_69 = arith.constant 0 : index
    %c0_70 = arith.constant 0 : index
    %144 = vector.load %arg11[%c0_69, %c0_70] : memref<8x32xf32, #tpu.memory_space<vmem>>, vector<8x32xf32>
    %145 = arith.addf %144, %143 : vector<8x32xf32>
    %c0_71 = arith.constant 0 : index
    %c0_72 = arith.constant 0 : index
    %146 = vector.load %arg11[%c0_71, %c0_72] : memref<8x32xf32, #tpu.memory_space<vmem>>, vector<8x32xf32>
    tpu.vector_store %arg11[%c0_71, %c0_72], %145 {strides = array<i32>} : memref<8x32xf32, #tpu.memory_space<vmem>>, vector<8x32xf32>,
    %c0_73 = arith.constant 0 : index
    %c0_74 = arith.constant 0 : index
    %147 = vector.load %arg11[%c0_73, %c0_74] : memref<8x32xf32, #tpu.memory_space<vmem>>, vector<8x32xf32>
    %148 = vector.broadcast %11 : vector<1x32xf32> to vector<8x32xf32>
    %149 = arith.addf %147, %148 : vector<8x32xf32>
    %150 = arith.addf %4, %149 : vector<8x32xf32>
    %cst_75 = arith.constant dense<0.000000e+00> : vector<8xf32>
    %151 = vector.multi_reduction <add>, %150, %cst_75 [1] : vector<8x32xf32> to vector<8xf32>
    %152 = vector.shape_cast %151 : vector<8xf32> to vector<8x1xf32>
    %cst_76 = arith.constant 3.200000e+01 : f32
    %153 = vector.broadcast %cst_76 : f32 to vector<8x1xf32>
    %154 = arith.divf %152, %153 : vector<8x1xf32>
    %155 = arith.mulf %150, %150 : vector<8x32xf32>
    %cst_77 = arith.constant dense<0.000000e+00> : vector<8xf32>
    %156 = vector.multi_reduction <add>, %155, %cst_77 [1] : vector<8x32xf32> to vector<8xf32>
    %157 = vector.shape_cast %156 : vector<8xf32> to vector<8x1xf32>
    %cst_78 = arith.constant 3.200000e+01 : f32
    %158 = vector.broadcast %cst_78 : f32 to vector<8x1xf32>
    %159 = arith.divf %157, %158 : vector<8x1xf32>
    %160 = arith.mulf %154, %154 : vector<8x1xf32>
    %161 = arith.subf %159, %160 : vector<8x1xf32>
    %162 = vector.broadcast %154 : vector<8x1xf32> to vector<8x32xf32>
    %163 = arith.subf %150, %162 : vector<8x32xf32>
    %cst_79 = arith.constant 9.99999974E-6 : f32
    %164 = vector.broadcast %cst_79 : f32 to vector<8x1xf32>
    %165 = arith.addf %161, %164 : vector<8x1xf32>
    %166 = math.rsqrt %165 : vector<8x1xf32>
    %167 = vector.broadcast %166 : vector<8x1xf32> to vector<8x32xf32>
    %168 = arith.mulf %163, %167 : vector<8x32xf32>
    %169 = vector.broadcast %14 : vector<1x32xf32> to vector<8x32xf32>
    %170 = arith.mulf %168, %169 : vector<8x32xf32>
    %171 = vector.broadcast %15 : vector<1x32xf32> to vector<8x32xf32>
    %172 = arith.addf %170, %171 : vector<8x32xf32>
    %173 = arith.truncf %172 : vector<8x32xf32> to vector<8x32xbf16>
    %c0_80 = arith.constant 0 : index
    %c0_81 = arith.constant 0 : index
    %c0_82 = arith.constant 0 : index
    %174 = vector.load %arg7[%c0_80, %c0_81, %c0_82] : memref<1x32x64xbf16, #tpu.memory_space<vmem>>, vector<1x32x64xbf16>
    %175 = vector.shape_cast %174 : vector<1x32x64xbf16> to vector<32x64xbf16>
    %cst_83 = arith.constant dense<0.000000e+00> : vector<8x64xf32>
    %176 = tpu.matmul %173, %175, %cst_83 {dimension_numbers = #tpu.dot_dimension_numbers<[1], [0], [0], [1], [0, 0, 1, 1], [], []>} : vector<8x32xbf16>, vector<32x64xbf16>, vector<8x64xf32> -> vector<8x64xf32>
    %177 = vector.broadcast %12 : vector<1x64xf32> to vector<8x64xf32>
    %178 = arith.addf %176, %177 : vector<8x64xf32>
    %cst_84 = arith.constant 0.000000e+00 : f32
    %179 = vector.broadcast %cst_84 : f32 to vector<8x64xf32>
    %180 = arith.maximumf %178, %179 : vector<8x64xf32>
    %181 = arith.truncf %180 : vector<8x64xf32> to vector<8x64xbf16>
    %c0_85 = arith.constant 0 : index
    %c0_86 = arith.constant 0 : index
    %c0_87 = arith.constant 0 : index
    %182 = vector.load %arg8[%c0_85, %c0_86, %c0_87] : memref<1x64x32xbf16, #tpu.memory_space<vmem>>, vector<1x64x32xbf16>
    %183 = vector.shape_cast %182 : vector<1x64x32xbf16> to vector<64x32xbf16>
    %cst_88 = arith.constant dense<0.000000e+00> : vector<8x32xf32>
    %184 = tpu.matmul %181, %183, %cst_88 {dimension_numbers = #tpu.dot_dimension_numbers<[1], [0], [0], [1], [0, 0, 1, 1], [], []>} : vector<8x64xbf16>, vector<64x32xbf16>, vector<8x32xf32> -> vector<8x32xf32>
    %185 = vector.broadcast %13 : vector<1x32xf32> to vector<8x32xf32>
    %186 = arith.addf %184, %185 : vector<8x32xf32>
    %187 = arith.addf %172, %186 : vector<8x32xf32>
    %cst_89 = arith.constant dense<0.000000e+00> : vector<8xf32>
    %188 = vector.multi_reduction <add>, %187, %cst_89 [1] : vector<8x32xf32> to vector<8xf32>
    %189 = vector.shape_cast %188 : vector<8xf32> to vector<8x1xf32>
    %cst_90 = arith.constant 3.200000e+01 : f32
    %190 = vector.broadcast %cst_90 : f32 to vector<8x1xf32>
    %191 = arith.divf %189, %190 : vector<8x1xf32>
    %192 = arith.mulf %187, %187 : vector<8x32xf32>
    %cst_91 = arith.constant dense<0.000000e+00> : vector<8xf32>
    %193 = vector.multi_reduction <add>, %192, %cst_91 [1] : vector<8x32xf32> to vector<8xf32>
    %194 = vector.shape_cast %193 : vector<8xf32> to vector<8x1xf32>
    %cst_92 = arith.constant 3.200000e+01 : f32
    %195 = vector.broadcast %cst_92 : f32 to vector<8x1xf32>
    %196 = arith.divf %194, %195 : vector<8x1xf32>
    %197 = arith.mulf %191, %191 : vector<8x1xf32>
    %198 = arith.subf %196, %197 : vector<8x1xf32>
    %199 = vector.broadcast %191 : vector<8x1xf32> to vector<8x32xf32>
    %200 = arith.subf %187, %199 : vector<8x32xf32>
    %cst_93 = arith.constant 9.99999974E-6 : f32
    %201 = vector.broadcast %cst_93 : f32 to vector<8x1xf32>
    %202 = arith.addf %198, %201 : vector<8x1xf32>
    %203 = math.rsqrt %202 : vector<8x1xf32>
    %204 = vector.broadcast %203 : vector<8x1xf32> to vector<8x32xf32>
    %205 = arith.mulf %200, %204 : vector<8x32xf32>
    %206 = vector.broadcast %16 : vector<1x32xf32> to vector<8x32xf32>
    %207 = arith.mulf %205, %206 : vector<8x32xf32>
    %208 = vector.broadcast %17 : vector<1x32xf32> to vector<8x32xf32>
    %209 = arith.addf %207, %208 : vector<8x32xf32>
    %210 = vector.shape_cast %209 : vector<8x32xf32> to vector<1x8x32xf32>
    %c0_94 = arith.constant 0 : index
    %c0_95 = arith.constant 0 : index
    %c0_96 = arith.constant 0 : index
    %211 = vector.load %arg10[%c0_94, %c0_95, %c0_96] : memref<1x8x32xf32, #tpu.memory_space<vmem>>, vector<1x8x32xf32>
    tpu.vector_store %arg10[%c0_94, %c0_95, %c0_96], %210 {strides = array<i32>} : memref<1x8x32xf32, #tpu.memory_space<vmem>>, vector<1x8x32xf32>,
    return
  }
  func.func @transform_0(%arg0: i32, %arg1: i32) -> (i32, i32, i32) {
    %c0_i32 = arith.constant 0 : i32
    %c0_i32_0 = arith.constant 0 : i32
    %c0_i32_1 = arith.constant 0 : i32
    return %arg0, %c0_i32, %c0_i32_0 : i32, i32, i32
  }
  func.func @transform_1(%arg0: i32, %arg1: i32) -> (i32, i32, i32) {
    %c0_i32 = arith.constant 0 : i32
    %c0_i32_0 = arith.constant 0 : i32
    %c0_i32_1 = arith.constant 0 : i32
    return %arg1, %c0_i32, %c0_i32_0 : i32, i32, i32
  }
  func.func @transform_2(%arg0: i32, %arg1: i32) -> (i32, i32, i32) {
    %c0_i32 = arith.constant 0 : i32
    %c0_i32_0 = arith.constant 0 : i32
    %c0_i32_1 = arith.constant 0 : i32
    return %arg1, %c0_i32, %c0_i32_0 : i32, i32, i32
  }
  func.func @transform_3(%arg0: i32, %arg1: i32) -> (i32, i32, i32) {
    %c0_i32 = arith.constant 0 : i32
    %c0_i32_0 = arith.constant 0 : i32
    %c0_i32_1 = arith.constant 0 : i32
    return %arg1, %c0_i32, %c0_i32_0 : i32, i32, i32
  }
  func.func @transform_4(%arg0: i32, %arg1: i32) -> (i32, i32, i32, i32) {
    %c0_i32 = arith.constant 0 : i32
    %c0_i32_0 = arith.constant 0 : i32
    %c0_i32_1 = arith.constant 0 : i32
    %c0_i32_2 = arith.constant 0 : i32
    return %arg1, %c0_i32, %c0_i32_0, %c0_i32_1 : i32, i32, i32, i32
  }
  func.func @transform_5(%arg0: i32, %arg1: i32) -> (i32, i32, i32) {
    %c0_i32 = arith.constant 0 : i32
    %c0_i32_0 = arith.constant 0 : i32
    %c0_i32_1 = arith.constant 0 : i32
    return %arg1, %c0_i32, %c0_i32_0 : i32, i32, i32
  }
  func.func @transform_6(%arg0: i32, %arg1: i32) -> (i32, i32, i32) {
    %c0_i32 = arith.constant 0 : i32
    %c0_i32_0 = arith.constant 0 : i32
    %c0_i32_1 = arith.constant 0 : i32
    return %arg1, %c0_i32, %c0_i32_0 : i32, i32, i32
  }
  func.func @transform_7(%arg0: i32, %arg1: i32) -> (i32, i32, i32) {
    %c0_i32 = arith.constant 0 : i32
    %c0_i32_0 = arith.constant 0 : i32
    %c0_i32_1 = arith.constant 0 : i32
    return %arg1, %c0_i32, %c0_i32_0 : i32, i32, i32
  }
  func.func @transform_8(%arg0: i32, %arg1: i32) -> (i32, i32, i32) {
    %c0_i32 = arith.constant 0 : i32
    %c0_i32_0 = arith.constant 0 : i32
    %c0_i32_1 = arith.constant 0 : i32
    return %arg0, %c0_i32, %c0_i32_0 : i32, i32, i32
  }
}

</mosaic_0001>

<llo_original>
// kernel: tpu_custom_call.1
$region0: #{tpu_custom_call.1}
  #allocation0 [shape = 'u32[]', space=smem, size = 0x4, offset = 0x4, fixed_abs, tag = 'smem constant byte address 0x4 - core index']
  #allocation1 [shape = 'u32[144,128]{1,0:T(1,128)}', space=vmem, size = 0x12000, scoped, tag = 'internal scratch']
  #allocation2 [shape = 'f32[8,32]{1,0:T(8,128)}', space=vmem, size = 0x1000, scoped, tag = 'scratch operand']
  %s0 = inlined_call_operand.hbm [shape: f32[2,8,32], index: 0, kind: input, shape index: {}]
  %s1 = inlined_call_operand.vmem [shape: bf16[2,32,32], index: 1, kind: input, shape index: {}]
  %s2 = inlined_call_operand.vmem [shape: bf16[2,32,32], index: 2, kind: input, shape index: {}]
  %s3 = inlined_call_operand.vmem [shape: bf16[2,32,32], index: 3, kind: input, shape index: {}]
  %s4 = inlined_call_operand.vmem [shape: bf16[2,4,8,32], index: 4, kind: input, shape index: {}]
  %s5 = inlined_call_operand.hbm [shape: bf16[2,32,64], index: 5, kind: input, shape index: {}]
  %s6 = inlined_call_operand.vmem [shape: bf16[2,64,32], index: 6, kind: input, shape index: {}]
  %s7 = inlined_call_operand.vmem [shape: f32[2,10,64], index: 7, kind: input, shape index: {}]
  %s8 = inlined_call_operand.hbm [shape: f32[2,8,32], index: 8, kind: output, shape index: {}]
  %s9 = sld [smem:[#allocation0]]
  $region77: #{tpu_custom_call.1} parent=0
    _
  %s11 = ssub.s32 1, %s9
  %s12 = scalar_select 0, %s11, %s9
  $region1: #{tpu_custom_call.1} parent=0
    #allocation3 [shape = 'u8[8192]{0}', space=vmem, size = 0x2000, scoped, tag = 'input window, operand 0']
    #allocation4 [shape = 's32[2]{0}', space=sflag, size = 0x8, scoped, tag = 'scoped memory for tpu_custom_call.1']
    #allocation5 [shape = 's32[2]{0}', space=sflag, size = 0x8, scoped, tag = 'scoped memory for tpu_custom_call.1']
    #allocation6 [shape = 'u8[16384]{0}', space=vmem, size = 0x4000, scoped, tag = 'input window, operand 5']
    #allocation7 [shape = 's32[2]{0}', space=sflag, size = 0x8, scoped, tag = 'scoped memory for tpu_custom_call.1']
    #allocation8 [shape = 'u8[8192]{0}', space=vmem, size = 0x2000, scoped, tag = 'output window, operand 0']
    %13 = vsyncpa [#allocation4], 0
    %s14 = scalar_lea.sflag [#allocation4], 1
    %15 = vsyncpa %s14, 0
    %16 = vsyncpa [#allocation7], 0
    %s17 = scalar_lea.sflag [#allocation7], 1
    %18 = vsyncpa %s17, 0
    %19 = vsyncpa [#allocation5], 0
    %s20 = scalar_lea.sflag [#allocation5], 1
    %21 = vsyncpa %s20, 0
    loop: start=0, step=1, limit=6
    $region2: #{tpu_custom_call.1} parent=1 // loop_pre_header
      _
    $region3: #{tpu_custom_call.1} parent=1 // loop_header
      %s23 = sphi 0, %s27
      %p24 = scmp.ge.s32.totalorder %s23, 6
      %s30 = sphi 0, %s42
      %s31 = sphi 0, %s38
      %s32 = sphi 0, %s30
      %s33 = sphi 0, %s31
      %s34 = sphi 0, %s32
      %s35 = sphi 0, %s33
      %s45 = sphi 0, %s47
      %s48 = sphi 0, %s45
      %s49 = sphi 0, %s48
      %s65 = sphi 0, %s49
      %s71 = sphi 0, %s73
      %s74 = sphi 0, %s71
      %s75 = sphi 0, %s74
      %s91 = sphi 0, %s75
      %s97 = sphi 0, %s99
      %s100 = sphi 0, %s97
      %s101 = sphi 0, %s100
      %s117 = sphi 0, %s101
      %s123 = sphi 0, %s125
      %s126 = sphi 0, %s123
      %s127 = sphi 0, %s126
      %s143 = sphi 0, %s127
      %s149 = sphi 0, %s151
      %s152 = sphi 0, %s149
      %s153 = sphi 0, %s152
      %s169 = sphi 0, %s153
      %s175 = sphi 0, %s177
      %s178 = sphi 0, %s175
      %s179 = sphi 0, %s178
      %s195 = sphi 0, %s179
      %s201 = sphi 0, %s203
      %s204 = sphi 0, %s201
      %s205 = sphi 0, %s204
      %s221 = sphi 0, %s205
      %s227 = sphi 0, %s229
      %s230 = sphi 0, %s227
      %s231 = sphi 0, %s230
      %s247 = sphi 0, %s231
      %s253 = sphi 0, %s255
      %s256 = sphi 0, %s253
      %s257 = sphi 0, %s256
      %s273 = sphi 0, %s257
    $region4: #{tpu_custom_call.1} parent=1 // loop_header_branch
      %26 = sbr.rel (%p24) target = $region8
    $region5: #{tpu_custom_call.1} parent=1 // loop_body
      %s28 = ssub.s32 %s23, 1
      %s29 = ssub.s32 %s23, 2
      %s36 = sadd.s32 1, %s31
      %p37 = scmp.ge.s32.totalorder %s36, 2
      %s38 = scalar_select %p37, 0, %s36
      %s39 = sadd.s32 1, %s30
      %s40 = scalar_select %p37, %s39, %s30
      %p41 = scmp.ge.s32.totalorder %s40, 2
      %s42 = scalar_select %p41, 0, %s40
      %s43 = ssub.s32 %s30, %s42
      %p44 = scmp.eq.s32.totalorder %s43, 0
      %s46 = sadd.s32 %s45, 1
      %s47 = scalar_select %p44, %s45, %s46
      %p50 = pneg %p44
      %p51 = scmp.eq.s32.totalorder %s23, 3
      %p52 = por %p50, %p51
      %p53 = scmp.ne.s32.totalorder %s45, %s48
      %p54 = scmp.eq.s32.totalorder %s23, 0
      %p55 = por %p53, %p54
      %p56 = scmp.ne.s32.totalorder %s45, %s48
      %p57 = scmp.eq.s32.totalorder %s28, 3
      %p58 = por %p56, %p57
      %p59 = scmp.ne.s32.totalorder %s48, %s49
      %p60 = scmp.eq.s32.totalorder %s28, 0
      %p61 = por %p59, %p60
      %p62 = scmp.ne.s32.totalorder %s48, %s49
      %p63 = scmp.eq.s32.totalorder %s29, 3
      %p64 = por %p62, %p63
      %p66 = scmp.ne.s32.totalorder %s49, %s65
      %p67 = scmp.eq.s32.totalorder %s29, 0
      %p68 = por %p66, %p67
      %s69 = ssub.s32 %s31, %s38
      %p70 = scmp.eq.s32.totalorder %s69, 0
      %s72 = sadd.s32 %s71, 1
      %s73 = scalar_select %p70, %s71, %s72
      %p76 = pneg %p70
      %p77 = scmp.eq.s32.totalorder %s23, 3
      %p78 = por %p76, %p77
      %p79 = scmp.ne.s32.totalorder %s71, %s74
      %p80 = scmp.eq.s32.totalorder %s23, 0
      %p81 = por %p79, %p80
      %p82 = scmp.ne.s32.totalorder %s71, %s74
      %p83 = scmp.eq.s32.totalorder %s28, 3
      %p84 = por %p82, %p83
      %p85 = scmp.ne.s32.totalorder %s74, %s75
      %p86 = scmp.eq.s32.totalorder %s28, 0
      %p87 = por %p85, %p86
      %p88 = scmp.ne.s32.totalorder %s74, %s75
      %p89 = scmp.eq.s32.totalorder %s29, 3
      %p90 = por %p88, %p89
      %p92 = scmp.ne.s32.totalorder %s75, %s91
      %p93 = scmp.eq.s32.totalorder %s29, 0
      %p94 = por %p92, %p93
      %s95 = ssub.s32 %s31, %s38
      %p96 = scmp.eq.s32.totalorder %s95, 0
      %s98 = sadd.s32 %s97, 1
      %s99 = scalar_select %p96, %s97, %s98
      %p102 = pneg %p96
      %p103 = scmp.eq.s32.totalorder %s23, 3
      %p104 = por %p102, %p103
      %p105 = scmp.ne.s32.totalorder %s97, %s100
      %p106 = scmp.eq.s32.totalorder %s23, 0
      %p107 = por %p105, %p106
      %p108 = scmp.ne.s32.totalorder %s97, %s100
      %p109 = scmp.eq.s32.totalorder %s28, 3
      %p110 = por %p108, %p109
      %p111 = scmp.ne.s32.totalorder %s100, %s101
      %p112 = scmp.eq.s32.totalorder %s28, 0
      %p113 = por %p111, %p112
      %p114 = scmp.ne.s32.totalorder %s100, %s101
      %p115 = scmp.eq.s32.totalorder %s29, 3
      %p116 = por %p114, %p115
      %p118 = scmp.ne.s32.totalorder %s101, %s117
      %p119 = scmp.eq.s32.totalorder %s29, 0
      %p120 = por %p118, %p119
      %s121 = ssub.s32 %s31, %s38
      %p122 = scmp.eq.s32.totalorder %s121, 0
      %s124 = sadd.s32 %s123, 1
      %s125 = scalar_select %p122, %s123, %s124
      %p128 = pneg %p122
      %p129 = scmp.eq.s32.totalorder %s23, 3
      %p130 = por %p128, %p129
      %p131 = scmp.ne.s32.totalorder %s123, %s126
      %p132 = scmp.eq.s32.totalorder %s23, 0
      %p133 = por %p131, %p132
      %p134 = scmp.ne.s32.totalorder %s123, %s126
      %p135 = scmp.eq.s32.totalorder %s28, 3
      %p136 = por %p134, %p135
      %p137 = scmp.ne.s32.totalorder %s126, %s127
      %p138 = scmp.eq.s32.totalorder %s28, 0
      %p139 = por %p137, %p138
      %p140 = scmp.ne.s32.totalorder %s126, %s127
      %p141 = scmp.eq.s32.totalorder %s29, 3
      %p142 = por %p140, %p141
      %p144 = scmp.ne.s32.totalorder %s127, %s143
      %p145 = scmp.eq.s32.totalorder %s29, 0
      %p146 = por %p144, %p145
      %s147 = ssub.s32 %s31, %s38
      %p148 = scmp.eq.s32.totalorder %s147, 0
      %s150 = sadd.s32 %s149, 1
      %s151 = scalar_select %p148, %s149, %s150
      %p154 = pneg %p148
      %p155 = scmp.eq.s32.totalorder %s23, 3
      %p156 = por %p154, %p155
      %p157 = scmp.ne.s32.totalorder %s149, %s152
      %p158 = scmp.eq.s32.totalorder %s23, 0
      %p159 = por %p157, %p158
      %p160 = scmp.ne.s32.totalorder %s149, %s152
      %p161 = scmp.eq.s32.totalorder %s28, 3
      %p162 = por %p160, %p161
      %p163 = scmp.ne.s32.totalorder %s152, %s153
      %p164 = scmp.eq.s32.totalorder %s28, 0
      %p165 = por %p163, %p164
      %p166 = scmp.ne.s32.totalorder %s152, %s153
      %p167 = scmp.eq.s32.totalorder %s29, 3
      %p168 = por %p166, %p167
      %p170 = scmp.ne.s32.totalorder %s153, %s169
      %p171 = scmp.eq.s32.totalorder %s29, 0
      %p172 = por %p170, %p171
      %s173 = ssub.s32 %s31, %s38
      %p174 = scmp.eq.s32.totalorder %s173, 0
      %s176 = sadd.s32 %s175, 1
      %s177 = scalar_select %p174, %s175, %s176
      %p180 = pneg %p174
      %p181 = scmp.eq.s32.totalorder %s23, 3
      %p182 = por %p180, %p181
      %p183 = scmp.ne.s32.totalorder %s175, %s178
      %p184 = scmp.eq.s32.totalorder %s23, 0
      %p185 = por %p183, %p184
      %p186 = scmp.ne.s32.totalorder %s175, %s178
      %p187 = scmp.eq.s32.totalorder %s28, 3
      %p188 = por %p186, %p187
      %p189 = scmp.ne.s32.totalorder %s178, %s179
      %p190 = scmp.eq.s32.totalorder %s28, 0
      %p191 = por %p189, %p190
      %p192 = scmp.ne.s32.totalorder %s178, %s179
      %p193 = scmp.eq.s32.totalorder %s29, 3
      %p194 = por %p192, %p193
      %p196 = scmp.ne.s32.totalorder %s179, %s195
      %p197 = scmp.eq.s32.totalorder %s29, 0
      %p198 = por %p196, %p197
      %s199 = ssub.s32 %s31, %s38
      %p200 = scmp.eq.s32.totalorder %s199, 0
      %s202 = sadd.s32 %s201, 1
      %s203 = scalar_select %p200, %s201, %s202
      %p206 = pneg %p200
      %p207 = scmp.eq.s32.totalorder %s23, 3
      %p208 = por %p206, %p207
      %p209 = scmp.ne.s32.totalorder %s201, %s204
      %p210 = scmp.eq.s32.totalorder %s23, 0
      %p211 = por %p209, %p210
      %p212 = scmp.ne.s32.totalorder %s201, %s204
      %p213 = scmp.eq.s32.totalorder %s28, 3
      %p214 = por %p212, %p213
      %p215 = scmp.ne.s32.totalorder %s204, %s205
      %p216 = scmp.eq.s32.totalorder %s28, 0
      %p217 = por %p215, %p216
      %p218 = scmp.ne.s32.totalorder %s204, %s205
      %p219 = scmp.eq.s32.totalorder %s29, 3
      %p220 = por %p218, %p219
      %p222 = scmp.ne.s32.totalorder %s205, %s221
      %p223 = scmp.eq.s32.totalorder %s29, 0
      %p224 = por %p222, %p223
      %s225 = ssub.s32 %s31, %s38
      %p226 = scmp.eq.s32.totalorder %s225, 0
      %s228 = sadd.s32 %s227, 1
      %s229 = scalar_select %p226, %s227, %s228
      %p232 = pneg %p226
      %p233 = scmp.eq.s32.totalorder %s23, 3
      %p234 = por %p232, %p233
      %p235 = scmp.ne.s32.totalorder %s227, %s230
      %p236 = scmp.eq.s32.totalorder %s23, 0
      %p237 = por %p235, %p236
      %p238 = scmp.ne.s32.totalorder %s227, %s230
      %p239 = scmp.eq.s32.totalorder %s28, 3
      %p240 = por %p238, %p239
      %p241 = scmp.ne.s32.totalorder %s230, %s231
      %p242 = scmp.eq.s32.totalorder %s28, 0
      %p243 = por %p241, %p242
      %p244 = scmp.ne.s32.totalorder %s230, %s231
      %p245 = scmp.eq.s32.totalorder %s29, 3
      %p246 = por %p244, %p245
      %p248 = scmp.ne.s32.totalorder %s231, %s247
      %p249 = scmp.eq.s32.totalorder %s29, 0
      %p250 = por %p248, %p249
      %s251 = ssub.s32 %s30, %s42
      %p252 = scmp.eq.s32.totalorder %s251, 0
      %s254 = sadd.s32 %s253, 1
      %s255 = scalar_select %p252, %s253, %s254
      %p258 = pneg %p252
      %p259 = scmp.eq.s32.totalorder %s23, 3
      %p260 = por %p258, %p259
      %p261 = scmp.ne.s32.totalorder %s253, %s256
      %p262 = scmp.eq.s32.totalorder %s23, 0
      %p263 = por %p261, %p262
      %p264 = scmp.ne.s32.totalorder %s253, %s256
      %p265 = scmp.eq.s32.totalorder %s28, 3
      %p266 = por %p264, %p265
      %p267 = scmp.ne.s32.totalorder %s256, %s257
      %p268 = scmp.eq.s32.totalorder %s28, 0
      %p269 = por %p267, %p268
      %p270 = scmp.ne.s32.totalorder %s256, %s257
      %p271 = scmp.eq.s32.totalorder %s29, 3
      %p272 = por %p270, %p271
      %p274 = scmp.ne.s32.totalorder %s257, %s273
      %p275 = scmp.eq.s32.totalorder %s29, 0
      %p276 = por %p274, %p275
      %p277 = scmp.le.s32.totalorder 1, %s23
      %p278 = scmp.lt.s32.totalorder %s23, 5
      %p279 = pnand %p277, %p278
      %p280 = pneg %p279
      // Predicated region
      $region9: #{tpu_custom_call.1} parent=5 // pred_check
        _
      $region10: #{tpu_custom_call.1} parent=5 // pred_check_branch
        %282 = sbr.rel (%p279) target = $region12
      $region11: #{tpu_custom_call.1} parent=5 // pred_region
        %s283 = ssub.s32 %s23, 1
      $region12: #{tpu_custom_call.1} parent=5 // pred_fallthru
        _
      %p284 = scmp.lt.s32.totalorder %s23, 4
      // Predicated region
      $region13: #{tpu_custom_call.1} parent=5 // pred_check
        %p285 = pneg %p284
      $region14: #{tpu_custom_call.1} parent=5 // pred_check_branch
        %287 = sbr.rel (%p285) target = $region16
      $region15: #{tpu_custom_call.1} parent=5 // pred_region
        // Predicated region
        $region17: #{tpu_custom_call.1} parent=15 // pred_check
          %p288 = pneg %p55
        $region18: #{tpu_custom_call.1} parent=15 // pred_check_branch
          %290 = sbr.rel (%p288) target = $region20
        $region19: #{tpu_custom_call.1} parent=15 // pred_region
          %s291 = sand.u32 %s45, 1
          %s292 = scalar_lea.sflag [#allocation4], %s291
          %s293 = sand.u32 %s45, 1
          %s294 = smul.addr %s293, 8
          %s295 = scalar_lea.vmem [#allocation3], %s294
          %s297 = ssub.s32 128, 128
          %298 = vsyncadd %s292, %s297
          %s299 = smul.addr %s30, 128
          %s300 = scalar_lea.hbm %s0, %s299
          %s302 = sshll.u32 %s295, 4
          %s303 = int_to_ptr.vmem [resolvable:$true] %s302
          %305 = dma.hbm_to_vmem [thread:$0]  %s300, 128, %s303, %s292
        $region20: #{tpu_custom_call.1} parent=15 // pred_fallthru
          _
        // Predicated region
        $region21: #{tpu_custom_call.1} parent=15 // pred_check
          %p306 = pneg %p81
        $region22: #{tpu_custom_call.1} parent=15 // pred_check_branch
          %308 = sbr.rel (%p306) target = $region24
        $region23: #{tpu_custom_call.1} parent=15 // pred_region
          %p309 = scmp.lt.s32.totalorder %s31, 1
          %s310 = scalar_select %p309, %s31, 1
          %s311 = smul.addr %s310, 4
          %s312 = smul.addr %s311, 4
          %s313 = scalar_lea.vmem %s1, %s312
        $region24: #{tpu_custom_call.1} parent=15 // pred_fallthru
          _
        // Predicated region
        $region25: #{tpu_custom_call.1} parent=15 // pred_check
          %p314 = pneg %p107
        $region26: #{tpu_custom_call.1} parent=15 // pred_check_branch
          %316 = sbr.rel (%p314) target = $region28
        $region27: #{tpu_custom_call.1} parent=15 // pred_region
          %p317 = scmp.lt.s32.totalorder %s31, 1
          %s318 = scalar_select %p317, %s31, 1
          %s319 = smul.addr %s318, 4
          %s320 = smul.addr %s319, 4
          %s321 = scalar_lea.vmem %s2, %s320
        $region28: #{tpu_custom_call.1} parent=15 // pred_fallthru
          _
        // Predicated region
        $region29: #{tpu_custom_call.1} parent=15 // pred_check
          %p322 = pneg %p133
        $region30: #{tpu_custom_call.1} parent=15 // pred_check_branch
          %324 = sbr.rel (%p322) target = $region32
        $region31: #{tpu_custom_call.1} parent=15 // pred_region
          %p325 = scmp.lt.s32.totalorder %s31, 1
          %s326 = scalar_select %p325, %s31, 1
          %s327 = smul.addr %s326, 4
          %s328 = smul.addr %s327, 4
          %s329 = scalar_lea.vmem %s3, %s328
        $region32: #{tpu_custom_call.1} parent=15 // pred_fallthru
          _
        // Predicated region
        $region33: #{tpu_custom_call.1} parent=15 // pred_check
          %p330 = pneg %p159
        $region34: #{tpu_custom_call.1} parent=15 // pred_check_branch
          %332 = sbr.rel (%p330) target = $region36
        $region35: #{tpu_custom_call.1} parent=15 // pred_region
          %p333 = scmp.lt.s32.totalorder %s31, 1
          %s334 = scalar_select %p333, %s31, 1
          %s335 = smul.addr %s334, 4
          %s336 = smul.addr %s335, 4
          %s337 = scalar_lea.vmem %s4, %s336
        $region36: #{tpu_custom_call.1} parent=15 // pred_fallthru
          _
        // Predicated region
        $region37: #{tpu_custom_call.1} parent=15 // pred_check
          %p338 = pneg %p185
        $region38: #{tpu_custom_call.1} parent=15 // pred_check_branch
          %340 = sbr.rel (%p338) target = $region40
        $region39: #{tpu_custom_call.1} parent=15 // pred_region
          %s341 = sand.u32 %s175, 1
          %s342 = scalar_lea.sflag [#allocation7], %s341
          %s343 = sand.u32 %s175, 1
          %s344 = smul.addr %s343, 16
          %s345 = scalar_lea.vmem [#allocation6], %s344
          %s347 = ssub.s32 256, 256
          %348 = vsyncadd %s342, %s347
          %s349 = smul.addr %s31, 4
          %s350 = smul.addr %s349, 64
          %s351 = scalar_lea.hbm %s5, %s350
          %s352 = sshll.u32 %s345, 4
          %s353 = int_to_ptr.vmem [resolvable:$true] %s352
          %358 = dma.hbm_to_vmem [thread:$0]  %s351, 256, %s353, %s342, 64, 64, 4
        $region40: #{tpu_custom_call.1} parent=15 // pred_fallthru
          _
        // Predicated region
        $region41: #{tpu_custom_call.1} parent=15 // pred_check
          %p359 = pneg %p211
        $region42: #{tpu_custom_call.1} parent=15 // pred_check_branch
          %361 = sbr.rel (%p359) target = $region44
        $region43: #{tpu_custom_call.1} parent=15 // pred_region
          %p362 = scmp.lt.s32.totalorder %s31, 1
          %s363 = scalar_select %p362, %s31, 1
          %s364 = smul.addr %s363, 8
          %s365 = smul.addr %s364, 4
          %s366 = scalar_lea.vmem %s6, %s365
        $region44: #{tpu_custom_call.1} parent=15 // pred_fallthru
          _
        // Predicated region
        $region45: #{tpu_custom_call.1} parent=15 // pred_check
          %p367 = pneg %p237
        $region46: #{tpu_custom_call.1} parent=15 // pred_check_branch
          %369 = sbr.rel (%p367) target = $region48
        $region47: #{tpu_custom_call.1} parent=15 // pred_region
          %p370 = scmp.lt.s32.totalorder %s31, 1
          %s371 = scalar_select %p370, %s31, 1
          %s372 = smul.addr %s371, 2
          %s373 = smul.addr %s372, 8
          %s374 = scalar_lea.vmem %s7, %s373
        $region48: #{tpu_custom_call.1} parent=15 // pred_fallthru
          _
      $region16: #{tpu_custom_call.1} parent=5 // pred_fallthru
        _
      %p375 = scmp.le.s32.totalorder 1, %s23
      %p376 = scmp.lt.s32.totalorder %s23, 5
      %p377 = pnand %p375, %p376
      %p378 = pneg %p377
      // Predicated region
      $region49: #{tpu_custom_call.1} parent=5 // pred_check
        _
      $region50: #{tpu_custom_call.1} parent=5 // pred_check_branch
        %380 = sbr.rel (%p377) target = $region52
      $region51: #{tpu_custom_call.1} parent=5 // pred_region
        %s381 = ssub.s32 %s23, 1
        %s382 = sand.u32 %s48, 1
        %s383 = scalar_lea.sflag [#allocation4], %s382
        %s384 = sand.u32 %s48, 1
        %s385 = smul.addr %s384, 8
        %s386 = scalar_lea.vmem [#allocation3], %s385
        // Predicated region
        $region53: #{tpu_custom_call.1} parent=51 // pred_check
          %p387 = pneg %p61
        $region54: #{tpu_custom_call.1} parent=51 // pred_check_branch
          %389 = sbr.rel (%p387) target = $region56
        $region55: #{tpu_custom_call.1} parent=51 // pred_region
          %390 = dma.done %s383, 128
        $region56: #{tpu_custom_call.1} parent=51 // pred_fallthru
          _
        %s391 = sand.u32 %s178, 1
        %s392 = scalar_lea.sflag [#allocation7], %s391
        %s393 = sand.u32 %s178, 1
        %s394 = smul.addr %s393, 16
        %s395 = scalar_lea.vmem [#allocation6], %s394
        // Predicated region
        $region57: #{tpu_custom_call.1} parent=51 // pred_check
          %p396 = pneg %p191
        $region58: #{tpu_custom_call.1} parent=51 // pred_check_branch
          %398 = sbr.rel (%p396) target = $region60
        $region59: #{tpu_custom_call.1} parent=51 // pred_region
          %399 = dma.done %s392, 256
        $region60: #{tpu_custom_call.1} parent=51 // pred_fallthru
          _
        %s400 = sand.u32 %s48, 1
        %s401 = scalar_lea.sflag [#allocation4], %s400
        %s402 = sand.u32 %s48, 1
        %s403 = smul.addr %s402, 8
        %s404 = scalar_lea.vmem [#allocation3], %s403
        %p405 = pneg %p61
        %p406 = pneg %p58
        %p407 = scmp.lt.s32.totalorder %s33, 1
        %s408 = scalar_select %p407, %s33, 1
        %s409 = smul.addr %s408, 4
        %s410 = smul.addr %s409, 4
        %s411 = scalar_lea.vmem %s1, %s410
        %p412 = pneg %p87
        %p413 = pneg %p84
        %p414 = scmp.lt.s32.totalorder %s33, 1
        %s415 = scalar_select %p414, %s33, 1
        %s416 = smul.addr %s415, 4
        %s417 = smul.addr %s416, 4
        %s418 = scalar_lea.vmem %s2, %s417
        %p419 = pneg %p113
        %p420 = pneg %p110
        %p421 = scmp.lt.s32.totalorder %s33, 1
        %s422 = scalar_select %p421, %s33, 1
        %s423 = smul.addr %s422, 4
        %s424 = smul.addr %s423, 4
        %s425 = scalar_lea.vmem %s3, %s424
        %p426 = pneg %p139
        %p427 = pneg %p136
        %p428 = scmp.lt.s32.totalorder %s33, 1
        %s429 = scalar_select %p428, %s33, 1
        %s430 = smul.addr %s429, 4
        %s431 = smul.addr %s430, 4
        %s432 = scalar_lea.vmem %s4, %s431
        %p433 = pneg %p165
        %p434 = pneg %p162
        %s435 = sand.u32 %s178, 1
        %s436 = scalar_lea.sflag [#allocation7], %s435
        %s437 = sand.u32 %s178, 1
        %s438 = smul.addr %s437, 16
        %s439 = scalar_lea.vmem [#allocation6], %s438
        %p440 = pneg %p191
        %p441 = pneg %p188
        %p442 = scmp.lt.s32.totalorder %s33, 1
        %s443 = scalar_select %p442, %s33, 1
        %s444 = smul.addr %s443, 8
        %s445 = smul.addr %s444, 4
        %s446 = scalar_lea.vmem %s6, %s445
        %p447 = pneg %p217
        %p448 = pneg %p214
        %p449 = scmp.lt.s32.totalorder %s33, 1
        %s450 = scalar_select %p449, %s33, 1
        %s451 = smul.addr %s450, 2
        %s452 = smul.addr %s451, 8
        %s453 = scalar_lea.vmem %s7, %s452
        %p454 = pneg %p243
        %p455 = pneg %p240
        %p456 = pneg %p269
        %p457 = pneg %p266
        %s458 = sand.u32 %s256, 1
        %s459 = scalar_lea.sflag [#allocation5], %s458
        %s460 = sand.u32 %s256, 1
        %s461 = smul.addr %s460, 8
        %s462 = scalar_lea.vmem [#allocation8], %s461
        %p463 = scmp.lt.s32.totalorder %s33, 1
        %s464 = scalar_select %p463, %s33, 1
        %s465 = smul.addr %s464, 4
        %s466 = smul.addr %s465, 4
        %s467 = scalar_lea.vmem %s1, %s466
        %p468 = scmp.lt.s32.totalorder %s33, 1
        %s469 = scalar_select %p468, %s33, 1
        %s470 = smul.addr %s469, 4
        %s471 = smul.addr %s470, 4
        %s472 = scalar_lea.vmem %s2, %s471
        %p473 = scmp.lt.s32.totalorder %s33, 1
        %s474 = scalar_select %p473, %s33, 1
        %s475 = smul.addr %s474, 4
        %s476 = smul.addr %s475, 4
        %s477 = scalar_lea.vmem %s3, %s476
        %p478 = scmp.lt.s32.totalorder %s33, 1
        %s479 = scalar_select %p478, %s33, 1
        %s480 = smul.addr %s479, 4
        %s481 = smul.addr %s480, 4
        %s482 = scalar_lea.vmem %s4, %s481
        %p483 = scmp.lt.s32.totalorder %s33, 1
        %s484 = scalar_select %p483, %s33, 1
        %s485 = smul.addr %s484, 8
        %s486 = smul.addr %s485, 4
        %s487 = scalar_lea.vmem %s6, %s486
        %p488 = scmp.lt.s32.totalorder %s33, 1
        %s489 = scalar_select %p488, %s33, 1
        %s490 = smul.addr %s489, 2
        %s491 = smul.addr %s490, 8
        %s492 = scalar_lea.vmem %s7, %s491
        %p494 = scmp.eq.s32.totalorder %s33, 0
        // Predicated region
        $region61: #{tpu_custom_call.1} parent=51 // pred_check
          %p495 = pneg %p494
        $region62: #{tpu_custom_call.1} parent=51 // pred_check_branch
          %497 = sbr.rel (%p495) target = $region64
        $region63: #{tpu_custom_call.1} parent=51 // pred_region
          %v498 = vld [vmem:[%s386] sm:$0xff]
          %vm499 = vcmask 261120
          %500 = vst.msk [vmem:[%s462] sm:$0xff] %vm499, %v498
        $region64: #{tpu_custom_call.1} parent=51 // pred_fallthru
          _
        %v501 = vld [vmem:[%s462] sm:$0xff]
        %v502 = vpack.c.bf16 %v501, %v501
        %v503 = vld [vmem:[%s492] sm:$0xff]
        %v504 = vld [vmem:[%s492 + $0x8] sm:$0x3]
        %v505 = vld [vmem:[%s467] sm:$0xf]
        %v506 = vld [vmem:[%s467 + $0x4] sm:$0xf]
        %v507 = vld [vmem:[%s467 + $0x8] sm:$0xf]
        %v508 = vld [vmem:[%s467 + $0xc] sm:$0xf]
        %v509 = vlaneseq
        %v510 = vshrl.u32 %v509, 7
        %v511 = vsub.s32 0, %v510
        %v512 = vrot.slane %v503, %v511
        %v517 = vunpack.c.l.b16 %v505
        %v518 = vunpack.c.l.b16 %v506
        %v519 = vunpack.c.l.b16 %v507
        %v520 = vunpack.c.l.b16 %v508
        %v521 = vpack.c.b16 %v518, %v517
        %v522 = vpack.c.b16 %v520, %v519
        %vm525 = vcmask 261120
        %v527 = vsel %vm525, %v502, 0
        %529 = vmatprep.subr.bf16.mxu0 0
        %530 = vmatpush1.bf16.msra.mxu0 %v521
        %531 = vmatprep.subr.bf16.mxu0 0
        %532 = vmatpush1.bf16.msra.mxu0 %v522
        %533 = vmatprep.subr.bf16.mxu0 0
        %534 = vmatpush1.bf16.msra.mxu0 0
        %535 = vmatprep.subr.bf16.mxu0 0
        %536 = vmatpush1.bf16.msra.mxu0 0
        %537 = vmatprep.subr.bf16.mxu0 0
        %538 = vmatpush1.bf16.msra.mxu0 0
        %539 = vmatprep.subr.bf16.mxu0 0
        %540 = vmatpush1.bf16.msra.mxu0 0
        %541 = vmatprep.subr.bf16.mxu0 0
        %542 = vmatpush1.bf16.msra.mxu0 0
        %543 = vmatprep.subr.bf16.mxu0 0
        %544 = vmatpush1.bf16.msra.mxu0 0
        %545 = vmatprep.subr.bf16.mxu0 0
        %546 = vmatpush1.bf16.msra.mxu0 0
        %547 = vmatprep.subr.bf16.mxu0 0
        %548 = vmatpush1.bf16.msra.mxu0 0
        %549 = vmatprep.subr.bf16.mxu0 0
        %550 = vmatpush1.bf16.msra.mxu0 0
        %551 = vmatprep.subr.bf16.mxu0 0
        %552 = vmatpush1.bf16.msra.mxu0 0
        %553 = vmatprep.subr.bf16.mxu0 0
        %554 = vmatpush1.bf16.msra.mxu0 0
        %555 = vmatprep.subr.bf16.mxu0 0
        %556 = vmatpush1.bf16.msra.mxu0 0
        %557 = vmatprep.subr.bf16.mxu0 0
        %558 = vmatpush1.bf16.msra.mxu0 0
        %559 = vmatprep.subr.bf16.mxu0 0
        %560 = vmatpush1.bf16.msra.mxu0 0
        %561 = vmatprep.mubr.bf16.mxu0 0
        %562 = vmatmul.mubr.bf16.gmra.mrb[0].mxu0 %v527
        %v563 = vpop.f32.mrb[0].mxu0
        %v564 = vadd.f32 %v512, %v563
        %v565 = vpop.f32.mrb[0].mxu0
        %v566 = vpop.f32.mrb[0].mxu0
        %v567 = vpop.f32.mrb[0].mxu0
        %568 = vdwg.mxu0
        %v569 = vld [vmem:[%s472] sm:$0xf]
        %v570 = vld [vmem:[%s472 + $0x4] sm:$0xf]
        %v571 = vld [vmem:[%s472 + $0x8] sm:$0xf]
        %v572 = vld [vmem:[%s472 + $0xc] sm:$0xf]
        %v573 = vlaneseq
        %v574 = vshrl.u32 %v573, 7
        %v575 = vsub.s32 1, %v574
        %v576 = vrot.slane %v503, %v575
        %v581 = vunpack.c.l.b16 %v569
        %v582 = vunpack.c.l.b16 %v570
        %v583 = vunpack.c.l.b16 %v571
        %v584 = vunpack.c.l.b16 %v572
        %v585 = vpack.c.b16 %v582, %v581
        %v586 = vpack.c.b16 %v584, %v583
        %589 = vmatprep.subr.bf16.mxu0 0
        %590 = vmatpush1.bf16.msra.mxu0 %v585
        %591 = vmatprep.subr.bf16.mxu0 0
        %592 = vmatpush1.bf16.msra.mxu0 %v586
        %593 = vmatprep.subr.bf16.mxu0 0
        %594 = vmatpush1.bf16.msra.mxu0 0
        %595 = vmatprep.subr.bf16.mxu0 0
        %596 = vmatpush1.bf16.msra.mxu0 0
        %597 = vmatprep.subr.bf16.mxu0 0
        %598 = vmatpush1.bf16.msra.mxu0 0
        %599 = vmatprep.subr.bf16.mxu0 0
        %600 = vmatpush1.bf16.msra.mxu0 0
        %601 = vmatprep.subr.bf16.mxu0 0
        %602 = vmatpush1.bf16.msra.mxu0 0
        %603 = vmatprep.subr.bf16.mxu0 0
        %604 = vmatpush1.bf16.msra.mxu0 0
        %605 = vmatprep.subr.bf16.mxu0 0
        %606 = vmatpush1.bf16.msra.mxu0 0
        %607 = vmatprep.subr.bf16.mxu0 0
        %608 = vmatpush1.bf16.msra.mxu0 0
        %609 = vmatprep.subr.bf16.mxu0 0
        %610 = vmatpush1.bf16.msra.mxu0 0
        %611 = vmatprep.subr.bf16.mxu0 0
        %612 = vmatpush1.bf16.msra.mxu0 0
        %613 = vmatprep.subr.bf16.mxu0 0
        %614 = vmatpush1.bf16.msra.mxu0 0
        %615 = vmatprep.subr.bf16.mxu0 0
        %616 = vmatpush1.bf16.msra.mxu0 0
        %617 = vmatprep.subr.bf16.mxu0 0
        %618 = vmatpush1.bf16.msra.mxu0 0
        %619 = vmatprep.subr.bf16.mxu0 0
        %620 = vmatpush1.bf16.msra.mxu0 0
        %621 = vmatprep.mubr.bf16.mxu0 0
        %622 = vmatmul.mubr.bf16.gmra.mrb[0].mxu0 %v527
        %v623 = vpop.f32.mrb[0].mxu0
        %v624 = vadd.f32 %v576, %v623
        %v625 = vpop.f32.mrb[0].mxu0
        %v626 = vpop.f32.mrb[0].mxu0
        %v627 = vpop.f32.mrb[0].mxu0
        %628 = vdwg.mxu0
        %v629 = vld [vmem:[%s477] sm:$0xf]
        %v630 = vld [vmem:[%s477 + $0x4] sm:$0xf]
        %v631 = vld [vmem:[%s477 + $0x8] sm:$0xf]
        %v632 = vld [vmem:[%s477 + $0xc] sm:$0xf]
        %v633 = vlaneseq
        %v634 = vshrl.u32 %v633, 7
        %v635 = vsub.s32 2, %v634
        %v636 = vrot.slane %v503, %v635
        %v641 = vunpack.c.l.b16 %v629
        %v642 = vunpack.c.l.b16 %v630
        %v643 = vunpack.c.l.b16 %v631
        %v644 = vunpack.c.l.b16 %v632
        %v645 = vpack.c.b16 %v642, %v641
        %v646 = vpack.c.b16 %v644, %v643
        %649 = vmatprep.subr.bf16.mxu0 0
        %650 = vmatpush1.bf16.msra.mxu0 %v645
        %651 = vmatprep.subr.bf16.mxu0 0
        %652 = vmatpush1.bf16.msra.mxu0 %v646
        %653 = vmatprep.subr.bf16.mxu0 0
        %654 = vmatpush1.bf16.msra.mxu0 0
        %655 = vmatprep.subr.bf16.mxu0 0
        %656 = vmatpush1.bf16.msra.mxu0 0
        %657 = vmatprep.subr.bf16.mxu0 0
        %658 = vmatpush1.bf16.msra.mxu0 0
        %659 = vmatprep.subr.bf16.mxu0 0
        %660 = vmatpush1.bf16.msra.mxu0 0
        %661 = vmatprep.subr.bf16.mxu0 0
        %662 = vmatpush1.bf16.msra.mxu0 0
        %663 = vmatprep.subr.bf16.mxu0 0
        %664 = vmatpush1.bf16.msra.mxu0 0
        %665 = vmatprep.subr.bf16.mxu0 0
        %666 = vmatpush1.bf16.msra.mxu0 0
        %667 = vmatprep.subr.bf16.mxu0 0
        %668 = vmatpush1.bf16.msra.mxu0 0
        %669 = vmatprep.subr.bf16.mxu0 0
        %670 = vmatpush1.bf16.msra.mxu0 0
        %671 = vmatprep.subr.bf16.mxu0 0
        %672 = vmatpush1.bf16.msra.mxu0 0
        %673 = vmatprep.subr.bf16.mxu0 0
        %674 = vmatpush1.bf16.msra.mxu0 0
        %675 = vmatprep.subr.bf16.mxu0 0
        %676 = vmatpush1.bf16.msra.mxu0 0
        %677 = vmatprep.subr.bf16.mxu0 0
        %678 = vmatpush1.bf16.msra.mxu0 0
        %679 = vmatprep.subr.bf16.mxu0 0
        %680 = vmatpush1.bf16.msra.mxu0 0
        %681 = vmatprep.mubr.bf16.mxu0 0
        %682 = vmatmul.mubr.bf16.gmra.mrb[0].mxu0 %v527
        %v683 = vpop.f32.mrb[0].mxu0
        %v684 = vadd.f32 %v636, %v683
        %v685 = vpop.f32.mrb[0].mxu0
        %v686 = vpop.f32.mrb[0].mxu0
        %v687 = vpop.f32.mrb[0].mxu0
        %688 = vdwg.mxu0
        %689 = vst.msk [vmem:[#allocation2] sm:$0xff] %vm525, 0.0
        %v690 = vpack.c.bf16 %v564, %v564
        %v691 = vpack.c.bf16 %v624, %v624
        %v692 = vpack.c.bf16 %v684, %v684
        %vm693 = vcmask 64512
        %v695 = vsel %vm693, %v690, 0
        %v698 = vsel %vm693, %v691, 0
        %700 = vmatprep.subr.bf16.mxu0 0
        %701 = vmatpush1.bf16.xpose.msra.mxu0 %v698
        %702 = vmatprep.subr.bf16.mxu0 0
        %703 = vmatpush1.bf16.xpose.msra.mxu0 0
        %704 = vmatprep.subr.bf16.mxu0 0
        %705 = vmatpush1.bf16.xpose.msra.mxu0 0
        %706 = vmatprep.subr.bf16.mxu0 0
        %707 = vmatpush1.bf16.xpose.msra.mxu0 0
        %708 = vmatprep.subr.bf16.mxu0 0
        %709 = vmatpush1.bf16.xpose.msra.mxu0 0
        %710 = vmatprep.subr.bf16.mxu0 0
        %711 = vmatpush1.bf16.xpose.msra.mxu0 0
        %712 = vmatprep.subr.bf16.mxu0 0
        %713 = vmatpush1.bf16.xpose.msra.mxu0 0
        %714 = vmatprep.subr.bf16.mxu0 0
        %715 = vmatpush1.bf16.xpose.msra.mxu0 0
        %716 = vmatprep.subr.bf16.mxu0 0
        %717 = vmatpush1.bf16.xpose.msra.mxu0 0
        %718 = vmatprep.subr.bf16.mxu0 0
        %719 = vmatpush1.bf16.xpose.msra.mxu0 0
        %720 = vmatprep.subr.bf16.mxu0 0
        %721 = vmatpush1.bf16.xpose.msra.mxu0 0
        %722 = vmatprep.subr.bf16.mxu0 0
        %723 = vmatpush1.bf16.xpose.msra.mxu0 0
        %724 = vmatprep.subr.bf16.mxu0 0
        %725 = vmatpush1.bf16.xpose.msra.mxu0 0
        %726 = vmatprep.subr.bf16.mxu0 0
        %727 = vmatpush1.bf16.xpose.msra.mxu0 0
        %728 = vmatprep.subr.bf16.mxu0 0
        %729 = vmatpush1.bf16.xpose.msra.mxu0 0
        %730 = vmatprep.subr.bf16.mxu0 0
        %731 = vmatpush1.bf16.xpose.msra.mxu0 0
        %732 = vmatprep.mubr.bf16.mxu0 0
        %733 = vmatmul.mubr.bf16.gmra.mrb[0].mxu0 %v695
        %v734 = vpop.f32.mrb[0].mxu0
        %v735 = vadd.f32 0.0, %v734
        %v736 = vpop.f32.mrb[0].mxu0
        %v737 = vpop.f32.mrb[0].mxu0
        %v738 = vpop.f32.mrb[0].mxu0
        %739 = vdwg.mxu0
        %v740 = vmul.f32 %v735, 0.35355338
        %v741 = vsel %vm693, %v740, -inf
        %742 = vmax.xlane.f32.xlu0 %v741
        %v743 = vpop.xlane.xlu0 %742
        %v744 = vsub.f32 %v740, %v743
        %v745 = vmul.f32 %v744, 1.442695
        %v746 = vpow.pop %v745
        %v747 = vsel %vm693, %v746, 0.0
        %748 = vadd.xlane.f32.xlu0 %v747
        %v749 = vpop.xlane.xlu0 %748
        %v750 = vrcp.pop %v749
        %v751 = vmul.f32 %v746, %v750
        %v752 = vpack.c.bf16 %v751, %v751
        %v754 = vsel %vm693, %v752, 0
        %vm756 = vcmask 1043456
        %v758 = vsel %vm756, %v692, 0
        %760 = vmatprep.subr.bf16.mxu0 0
        %761 = vmatpush1.bf16.msra.mxu0 %v758
        %762 = vmatprep.subr.bf16.mxu0 0
        %763 = vmatpush1.bf16.msra.mxu0 0
        %764 = vmatprep.subr.bf16.mxu0 0
        %765 = vmatpush1.bf16.msra.mxu0 0
        %766 = vmatprep.subr.bf16.mxu0 0
        %767 = vmatpush1.bf16.msra.mxu0 0
        %768 = vmatprep.subr.bf16.mxu0 0
        %769 = vmatpush1.bf16.msra.mxu0 0
        %770 = vmatprep.subr.bf16.mxu0 0
        %771 = vmatpush1.bf16.msra.mxu0 0
        %772 = vmatprep.subr.bf16.mxu0 0
        %773 = vmatpush1.bf16.msra.mxu0 0
        %774 = vmatprep.subr.bf16.mxu0 0
        %775 = vmatpush1.bf16.msra.mxu0 0
        %776 = vmatprep.subr.bf16.mxu0 0
        %777 = vmatpush1.bf16.msra.mxu0 0
        %778 = vmatprep.subr.bf16.mxu0 0
        %779 = vmatpush1.bf16.msra.mxu0 0
        %780 = vmatprep.subr.bf16.mxu0 0
        %781 = vmatpush1.bf16.msra.mxu0 0
        %782 = vmatprep.subr.bf16.mxu0 0
        %783 = vmatpush1.bf16.msra.mxu0 0
        %784 = vmatprep.subr.bf16.mxu0 0
        %785 = vmatpush1.bf16.msra.mxu0 0
        %786 = vmatprep.subr.bf16.mxu0 0
        %787 = vmatpush1.bf16.msra.mxu0 0
        %788 = vmatprep.subr.bf16.mxu0 0
        %789 = vmatpush1.bf16.msra.mxu0 0
        %790 = vmatprep.subr.bf16.mxu0 0
        %791 = vmatpush1.bf16.msra.mxu0 0
        %792 = vmatprep.mubr.bf16.mxu0 0
        %793 = vmatmul.mubr.bf16.gmra.mrb[0].mxu0 %v754
        %v794 = vpop.f32.mrb[0].mxu0
        %v795 = vadd.f32 0.0, %v794
        %v796 = vpop.f32.mrb[0].mxu0
        %v797 = vpop.f32.mrb[0].mxu0
        %v798 = vpop.f32.mrb[0].mxu0
        %799 = vdwg.mxu0
        %v800 = vpack.c.bf16 %v795, %v795
        %v801 = vld [vmem:[%s482] sm:$0xf]
        %v803 = vsel %vm693, %v800, 0
        %v806 = vsel %vm756, %v801, 0
        %808 = vmatprep.subr.bf16.mxu0 0
        %809 = vmatpush1.bf16.msra.mxu0 %v806
        %810 = vmatprep.subr.bf16.mxu0 0
        %811 = vmatpush1.bf16.msra.mxu0 0
        %812 = vmatprep.subr.bf16.mxu0 0
        %813 = vmatpush1.bf16.msra.mxu0 0
        %814 = vmatprep.subr.bf16.mxu0 0
        %815 = vmatpush1.bf16.msra.mxu0 0
        %816 = vmatprep.subr.bf16.mxu0 0
        %817 = vmatpush1.bf16.msra.mxu0 0
        %818 = vmatprep.subr.bf16.mxu0 0
        %819 = vmatpush1.bf16.msra.mxu0 0
        %820 = vmatprep.subr.bf16.mxu0 0
        %821 = vmatpush1.bf16.msra.mxu0 0
        %822 = vmatprep.subr.bf16.mxu0 0
        %823 = vmatpush1.bf16.msra.mxu0 0
        %824 = vmatprep.subr.bf16.mxu0 0
        %825 = vmatpush1.bf16.msra.mxu0 0
        %826 = vmatprep.subr.bf16.mxu0 0
        %827 = vmatpush1.bf16.msra.mxu0 0
        %828 = vmatprep.subr.bf16.mxu0 0
        %829 = vmatpush1.bf16.msra.mxu0 0
        %830 = vmatprep.subr.bf16.mxu0 0
        %831 = vmatpush1.bf16.msra.mxu0 0
        %832 = vmatprep.subr.bf16.mxu0 0
        %833 = vmatpush1.bf16.msra.mxu0 0
        %834 = vmatprep.subr.bf16.mxu0 0
        %835 = vmatpush1.bf16.msra.mxu0 0
        %836 = vmatprep.subr.bf16.mxu0 0
        %837 = vmatpush1.bf16.msra.mxu0 0
        %838 = vmatprep.subr.bf16.mxu0 0
        %839 = vmatpush1.bf16.msra.mxu0 0
        %840 = vmatprep.mubr.bf16.mxu0 0
        %841 = vmatmul.mubr.bf16.gmra.mrb[0].mxu0 %v803
        %v842 = vpop.f32.mrb[0].mxu0
        %v843 = vadd.f32 0.0, %v842
        %v844 = vpop.f32.mrb[0].mxu0
        %v845 = vpop.f32.mrb[0].mxu0
        %v846 = vpop.f32.mrb[0].mxu0
        %847 = vdwg.mxu0
        %v848 = vld [vmem:[#allocation2] sm:$0xff]
        %v849 = vadd.f32 %v848, %v843
        %850 = vst.msk [vmem:[#allocation2] sm:$0xff] %vm525, %v849
        %852 = vrot.lane.b32.xlu0 %v690, 120
        %v853 = vpop.permute.xlu0 %852
        %855 = vrot.lane.b32.xlu0 %v691, 120
        %v856 = vpop.permute.xlu0 %855
        %v858 = vsel %vm693, %v853, 0
        %v861 = vsel %vm693, %v856, 0
        %863 = vmatprep.subr.bf16.mxu0 0
        %864 = vmatpush1.bf16.xpose.msra.mxu0 %v861
        %865 = vmatprep.subr.bf16.mxu0 0
        %866 = vmatpush1.bf16.xpose.msra.mxu0 0
        %867 = vmatprep.subr.bf16.mxu0 0
        %868 = vmatpush1.bf16.xpose.msra.mxu0 0
        %869 = vmatprep.subr.bf16.mxu0 0
        %870 = vmatpush1.bf16.xpose.msra.mxu0 0
        %871 = vmatprep.subr.bf16.mxu0 0
        %872 = vmatpush1.bf16.xpose.msra.mxu0 0
        %873 = vmatprep.subr.bf16.mxu0 0
        %874 = vmatpush1.bf16.xpose.msra.mxu0 0
        %875 = vmatprep.subr.bf16.mxu0 0
        %876 = vmatpush1.bf16.xpose.msra.mxu0 0
        %877 = vmatprep.subr.bf16.mxu0 0
        %878 = vmatpush1.bf16.xpose.msra.mxu0 0
        %879 = vmatprep.subr.bf16.mxu0 0
        %880 = vmatpush1.bf16.xpose.msra.mxu0 0
        %881 = vmatprep.subr.bf16.mxu0 0
        %882 = vmatpush1.bf16.xpose.msra.mxu0 0
        %883 = vmatprep.subr.bf16.mxu0 0
        %884 = vmatpush1.bf16.xpose.msra.mxu0 0
        %885 = vmatprep.subr.bf16.mxu0 0
        %886 = vmatpush1.bf16.xpose.msra.mxu0 0
        %887 = vmatprep.subr.bf16.mxu0 0
        %888 = vmatpush1.bf16.xpose.msra.mxu0 0
        %889 = vmatprep.subr.bf16.mxu0 0
        %890 = vmatpush1.bf16.xpose.msra.mxu0 0
        %891 = vmatprep.subr.bf16.mxu0 0
        %892 = vmatpush1.bf16.xpose.msra.mxu0 0
        %893 = vmatprep.subr.bf16.mxu0 0
        %894 = vmatpush1.bf16.xpose.msra.mxu0 0
        %895 = vmatprep.mubr.bf16.mxu0 0
        %896 = vmatmul.mubr.bf16.gmra.mrb[0].mxu0 %v858
        %v897 = vpop.f32.mrb[0].mxu0
        %v898 = vadd.f32 0.0, %v897
        %v899 = vpop.f32.mrb[0].mxu0
        %v900 = vpop.f32.mrb[0].mxu0
        %v901 = vpop.f32.mrb[0].mxu0
        %902 = vdwg.mxu0
        %v903 = vmul.f32 %v898, 0.35355338
        %v904 = vsel %vm693, %v903, -inf
        %905 = vmax.xlane.f32.xlu0 %v904
        %v906 = vpop.xlane.xlu0 %905
        %v907 = vsub.f32 %v903, %v906
        %v908 = vmul.f32 %v907, 1.442695
        %v909 = vpow.pop %v908
        %v910 = vsel %vm693, %v909, 0.0
        %911 = vadd.xlane.f32.xlu0 %v910
        %v912 = vpop.xlane.xlu0 %911
        %v913 = vrcp.pop %v912
        %v914 = vmul.f32 %v909, %v913
        %v915 = vpack.c.bf16 %v914, %v914
        %917 = vrot.lane.b32.xlu0 %v692, 120
        %v918 = vpop.permute.xlu0 %917
        %v920 = vsel %vm693, %v915, 0
        %v923 = vsel %vm756, %v918, 0
        %925 = vmatprep.subr.bf16.mxu0 0
        %926 = vmatpush1.bf16.msra.mxu0 %v923
        %927 = vmatprep.subr.bf16.mxu0 0
        %928 = vmatpush1.bf16.msra.mxu0 0
        %929 = vmatprep.subr.bf16.mxu0 0
        %930 = vmatpush1.bf16.msra.mxu0 0
        %931 = vmatprep.subr.bf16.mxu0 0
        %932 = vmatpush1.bf16.msra.mxu0 0
        %933 = vmatprep.subr.bf16.mxu0 0
        %934 = vmatpush1.bf16.msra.mxu0 0
        %935 = vmatprep.subr.bf16.mxu0 0
        %936 = vmatpush1.bf16.msra.mxu0 0
        %937 = vmatprep.subr.bf16.mxu0 0
        %938 = vmatpush1.bf16.msra.mxu0 0
        %939 = vmatprep.subr.bf16.mxu0 0
        %940 = vmatpush1.bf16.msra.mxu0 0
        %941 = vmatprep.subr.bf16.mxu0 0
        %942 = vmatpush1.bf16.msra.mxu0 0
        %943 = vmatprep.subr.bf16.mxu0 0
        %944 = vmatpush1.bf16.msra.mxu0 0
        %945 = vmatprep.subr.bf16.mxu0 0
        %946 = vmatpush1.bf16.msra.mxu0 0
        %947 = vmatprep.subr.bf16.mxu0 0
        %948 = vmatpush1.bf16.msra.mxu0 0
        %949 = vmatprep.subr.bf16.mxu0 0
        %950 = vmatpush1.bf16.msra.mxu0 0
        %951 = vmatprep.subr.bf16.mxu0 0
        %952 = vmatpush1.bf16.msra.mxu0 0
        %953 = vmatprep.subr.bf16.mxu0 0
        %954 = vmatpush1.bf16.msra.mxu0 0
        %955 = vmatprep.subr.bf16.mxu0 0
        %956 = vmatpush1.bf16.msra.mxu0 0
        %957 = vmatprep.mubr.bf16.mxu0 0
        %958 = vmatmul.mubr.bf16.gmra.mrb[0].mxu0 %v920
        %v959 = vpop.f32.mrb[0].mxu0
        %v960 = vadd.f32 0.0, %v959
        %v961 = vpop.f32.mrb[0].mxu0
        %v962 = vpop.f32.mrb[0].mxu0
        %v963 = vpop.f32.mrb[0].mxu0
        %964 = vdwg.mxu0
        %v965 = vpack.c.bf16 %v960, %v960
        %s966 = scalar_lea.vmem %s482, 4
        %v967 = vld [vmem:[%s966] sm:$0xf]
        %v969 = vsel %vm693, %v965, 0
        %v972 = vsel %vm756, %v967, 0
        %974 = vmatprep.subr.bf16.mxu0 0
        %975 = vmatpush1.bf16.msra.mxu0 %v972
        %976 = vmatprep.subr.bf16.mxu0 0
        %977 = vmatpush1.bf16.msra.mxu0 0
        %978 = vmatprep.subr.bf16.mxu0 0
        %979 = vmatpush1.bf16.msra.mxu0 0
        %980 = vmatprep.subr.bf16.mxu0 0
        %981 = vmatpush1.bf16.msra.mxu0 0
        %982 = vmatprep.subr.bf16.mxu0 0
        %983 = vmatpush1.bf16.msra.mxu0 0
        %984 = vmatprep.subr.bf16.mxu0 0
        %985 = vmatpush1.bf16.msra.mxu0 0
        %986 = vmatprep.subr.bf16.mxu0 0
        %987 = vmatpush1.bf16.msra.mxu0 0
        %988 = vmatprep.subr.bf16.mxu0 0
        %989 = vmatpush1.bf16.msra.mxu0 0
        %990 = vmatprep.subr.bf16.mxu0 0
        %991 = vmatpush1.bf16.msra.mxu0 0
        %992 = vmatprep.subr.bf16.mxu0 0
        %993 = vmatpush1.bf16.msra.mxu0 0
        %994 = vmatprep.subr.bf16.mxu0 0
        %995 = vmatpush1.bf16.msra.mxu0 0
        %996 = vmatprep.subr.bf16.mxu0 0
        %997 = vmatpush1.bf16.msra.mxu0 0
        %998 = vmatprep.subr.bf16.mxu0 0
        %999 = vmatpush1.bf16.msra.mxu0 0
        %1000 = vmatprep.subr.bf16.mxu0 0
        %1001 = vmatpush1.bf16.msra.mxu0 0
        %1002 = vmatprep.subr.bf16.mxu0 0
        %1003 = vmatpush1.bf16.msra.mxu0 0
        %1004 = vmatprep.subr.bf16.mxu0 0
        %1005 = vmatpush1.bf16.msra.mxu0 0
        %1006 = vmatprep.mubr.bf16.mxu0 0
        %1007 = vmatmul.mubr.bf16.gmra.mrb[0].mxu0 %v969
        %v1008 = vpop.f32.mrb[0].mxu0
        %v1009 = vadd.f32 0.0, %v1008
        %v1010 = vpop.f32.mrb[0].mxu0
        %v1011 = vpop.f32.mrb[0].mxu0
        %v1012 = vpop.f32.mrb[0].mxu0
        %1013 = vdwg.mxu0
        %v1014 = vld [vmem:[#allocation2] sm:$0xff]
        %v1015 = vadd.f32 %v1014, %v1009
        %1016 = vst.msk [vmem:[#allocation2] sm:$0xff] %vm525, %v1015
        %1017 = vrot.lane.b32.xlu0 %v690, 112
        %v1018 = vpop.permute.xlu0 %1017
        %1019 = vrot.lane.b32.xlu0 %v691, 112
        %v1020 = vpop.permute.xlu0 %1019
        %v1022 = vsel %vm693, %v1018, 0
        %v1025 = vsel %vm693, %v1020, 0
        %1027 = vmatprep.subr.bf16.mxu0 0
        %1028 = vmatpush1.bf16.xpose.msra.mxu0 %v1025
        %1029 = vmatprep.subr.bf16.mxu0 0
        %1030 = vmatpush1.bf16.xpose.msra.mxu0 0
        %1031 = vmatprep.subr.bf16.mxu0 0
        %1032 = vmatpush1.bf16.xpose.msra.mxu0 0
        %1033 = vmatprep.subr.bf16.mxu0 0
        %1034 = vmatpush1.bf16.xpose.msra.mxu0 0
        %1035 = vmatprep.subr.bf16.mxu0 0
        %1036 = vmatpush1.bf16.xpose.msra.mxu0 0
        %1037 = vmatprep.subr.bf16.mxu0 0
        %1038 = vmatpush1.bf16.xpose.msra.mxu0 0
        %1039 = vmatprep.subr.bf16.mxu0 0
        %1040 = vmatpush1.bf16.xpose.msra.mxu0 0
        %1041 = vmatprep.subr.bf16.mxu0 0
        %1042 = vmatpush1.bf16.xpose.msra.mxu0 0
        %1043 = vmatprep.subr.bf16.mxu0 0
        %1044 = vmatpush1.bf16.xpose.msra.mxu0 0
        %1045 = vmatprep.subr.bf16.mxu0 0
        %1046 = vmatpush1.bf16.xpose.msra.mxu0 0
        %1047 = vmatprep.subr.bf16.mxu0 0
        %1048 = vmatpush1.bf16.xpose.msra.mxu0 0
        %1049 = vmatprep.subr.bf16.mxu0 0
        %1050 = vmatpush1.bf16.xpose.msra.mxu0 0
        %1051 = vmatprep.subr.bf16.mxu0 0
        %1052 = vmatpush1.bf16.xpose.msra.mxu0 0
        %1053 = vmatprep.subr.bf16.mxu0 0
        %1054 = vmatpush1.bf16.xpose.msra.mxu0 0
        %1055 = vmatprep.subr.bf16.mxu0 0
        %1056 = vmatpush1.bf16.xpose.msra.mxu0 0
        %1057 = vmatprep.subr.bf16.mxu0 0
        %1058 = vmatpush1.bf16.xpose.msra.mxu0 0
        %1059 = vmatprep.mubr.bf16.mxu0 0
        %1060 = vmatmul.mubr.bf16.gmra.mrb[0].mxu0 %v1022
        %v1061 = vpop.f32.mrb[0].mxu0
        %v1062 = vadd.f32 0.0, %v1061
        %v1063 = vpop.f32.mrb[0].mxu0
        %v1064 = vpop.f32.mrb[0].mxu0
        %v1065 = vpop.f32.mrb[0].mxu0
        %1066 = vdwg.mxu0
        %v1067 = vmul.f32 %v1062, 0.35355338
        %v1068 = vsel %vm693, %v1067, -inf
        %1069 = vmax.xlane.f32.xlu0 %v1068
        %v1070 = vpop.xlane.xlu0 %1069
        %v1071 = vsub.f32 %v1067, %v1070
        %v1072 = vmul.f32 %v1071, 1.442695
        %v1073 = vpow.pop %v1072
        %v1074 = vsel %vm693, %v1073, 0.0
        %1075 = vadd.xlane.f32.xlu0 %v1074
        %v1076 = vpop.xlane.xlu0 %1075
        %v1077 = vrcp.pop %v1076
        %v1078 = vmul.f32 %v1073, %v1077
        %v1079 = vpack.c.bf16 %v1078, %v1078
        %1080 = vrot.lane.b32.xlu0 %v692, 112
        %v1081 = vpop.permute.xlu0 %1080
        %v1083 = vsel %vm693, %v1079, 0
        %v1086 = vsel %vm756, %v1081, 0
        %1088 = vmatprep.subr.bf16.mxu0 0
        %1089 = vmatpush1.bf16.msra.mxu0 %v1086
        %1090 = vmatprep.subr.bf16.mxu0 0
        %1091 = vmatpush1.bf16.msra.mxu0 0
        %1092 = vmatprep.subr.bf16.mxu0 0
        %1093 = vmatpush1.bf16.msra.mxu0 0
        %1094 = vmatprep.subr.bf16.mxu0 0
        %1095 = vmatpush1.bf16.msra.mxu0 0
        %1096 = vmatprep.subr.bf16.mxu0 0
        %1097 = vmatpush1.bf16.msra.mxu0 0
        %1098 = vmatprep.subr.bf16.mxu0 0
        %1099 = vmatpush1.bf16.msra.mxu0 0
        %1100 = vmatprep.subr.bf16.mxu0 0
        %1101 = vmatpush1.bf16.msra.mxu0 0
        %1102 = vmatprep.subr.bf16.mxu0 0
        %1103 = vmatpush1.bf16.msra.mxu0 0
        %1104 = vmatprep.subr.bf16.mxu0 0
        %1105 = vmatpush1.bf16.msra.mxu0 0
        %1106 = vmatprep.subr.bf16.mxu0 0
        %1107 = vmatpush1.bf16.msra.mxu0 0
        %1108 = vmatprep.subr.bf16.mxu0 0
        %1109 = vmatpush1.bf16.msra.mxu0 0
        %1110 = vmatprep.subr.bf16.mxu0 0
        %1111 = vmatpush1.bf16.msra.mxu0 0
        %1112 = vmatprep.subr.bf16.mxu0 0
        %1113 = vmatpush1.bf16.msra.mxu0 0
        %1114 = vmatprep.subr.bf16.mxu0 0
        %1115 = vmatpush1.bf16.msra.mxu0 0
        %1116 = vmatprep.subr.bf16.mxu0 0
        %1117 = vmatpush1.bf16.msra.mxu0 0
        %1118 = vmatprep.subr.bf16.mxu0 0
        %1119 = vmatpush1.bf16.msra.mxu0 0
        %1120 = vmatprep.mubr.bf16.mxu0 0
        %1121 = vmatmul.mubr.bf16.gmra.mrb[0].mxu0 %v1083
        %v1122 = vpop.f32.mrb[0].mxu0
        %v1123 = vadd.f32 0.0, %v1122
        %v1124 = vpop.f32.mrb[0].mxu0
        %v1125 = vpop.f32.mrb[0].mxu0
        %v1126 = vpop.f32.mrb[0].mxu0
        %1127 = vdwg.mxu0
        %v1128 = vpack.c.bf16 %v1123, %v1123
        %s1129 = scalar_lea.vmem %s482, 8
        %v1130 = vld [vmem:[%s1129] sm:$0xf]
        %v1132 = vsel %vm693, %v1128, 0
        %v1135 = vsel %vm756, %v1130, 0
        %1137 = vmatprep.subr.bf16.mxu0 0
        %1138 = vmatpush1.bf16.msra.mxu0 %v1135
        %1139 = vmatprep.subr.bf16.mxu0 0
        %1140 = vmatpush1.bf16.msra.mxu0 0
        %1141 = vmatprep.subr.bf16.mxu0 0
        %1142 = vmatpush1.bf16.msra.mxu0 0
        %1143 = vmatprep.subr.bf16.mxu0 0
        %1144 = vmatpush1.bf16.msra.mxu0 0
        %1145 = vmatprep.subr.bf16.mxu0 0
        %1146 = vmatpush1.bf16.msra.mxu0 0
        %1147 = vmatprep.subr.bf16.mxu0 0
        %1148 = vmatpush1.bf16.msra.mxu0 0
        %1149 = vmatprep.subr.bf16.mxu0 0
        %1150 = vmatpush1.bf16.msra.mxu0 0
        %1151 = vmatprep.subr.bf16.mxu0 0
        %1152 = vmatpush1.bf16.msra.mxu0 0
        %1153 = vmatprep.subr.bf16.mxu0 0
        %1154 = vmatpush1.bf16.msra.mxu0 0
        %1155 = vmatprep.subr.bf16.mxu0 0
        %1156 = vmatpush1.bf16.msra.mxu0 0
        %1157 = vmatprep.subr.bf16.mxu0 0
        %1158 = vmatpush1.bf16.msra.mxu0 0
        %1159 = vmatprep.subr.bf16.mxu0 0
        %1160 = vmatpush1.bf16.msra.mxu0 0
        %1161 = vmatprep.subr.bf16.mxu0 0
        %1162 = vmatpush1.bf16.msra.mxu0 0
        %1163 = vmatprep.subr.bf16.mxu0 0
        %1164 = vmatpush1.bf16.msra.mxu0 0
        %1165 = vmatprep.subr.bf16.mxu0 0
        %1166 = vmatpush1.bf16.msra.mxu0 0
        %1167 = vmatprep.subr.bf16.mxu0 0
        %1168 = vmatpush1.bf16.msra.mxu0 0
        %1169 = vmatprep.mubr.bf16.mxu0 0
        %1170 = vmatmul.mubr.bf16.gmra.mrb[0].mxu0 %v1132
        %v1171 = vpop.f32.mrb[0].mxu0
        %v1172 = vadd.f32 0.0, %v1171
        %v1173 = vpop.f32.mrb[0].mxu0
        %v1174 = vpop.f32.mrb[0].mxu0
        %v1175 = vpop.f32.mrb[0].mxu0
        %1176 = vdwg.mxu0
        %v1177 = vld [vmem:[#allocation2] sm:$0xff]
        %v1178 = vadd.f32 %v1177, %v1172
        %1179 = vst.msk [vmem:[#allocation2] sm:$0xff] %vm525, %v1178
        %1180 = vrot.lane.b32.xlu0 %v690, 104
        %v1181 = vpop.permute.xlu0 %1180
        %1182 = vrot.lane.b32.xlu0 %v691, 104
        %v1183 = vpop.permute.xlu0 %1182
        %v1185 = vsel %vm693, %v1181, 0
        %v1188 = vsel %vm693, %v1183, 0
        %1190 = vmatprep.subr.bf16.mxu0 0
        %1191 = vmatpush1.bf16.xpose.msra.mxu0 %v1188
        %1192 = vmatprep.subr.bf16.mxu0 0
        %1193 = vmatpush1.bf16.xpose.msra.mxu0 0
        %1194 = vmatprep.subr.bf16.mxu0 0
        %1195 = vmatpush1.bf16.xpose.msra.mxu0 0
        %1196 = vmatprep.subr.bf16.mxu0 0
        %1197 = vmatpush1.bf16.xpose.msra.mxu0 0
        %1198 = vmatprep.subr.bf16.mxu0 0
        %1199 = vmatpush1.bf16.xpose.msra.mxu0 0
        %1200 = vmatprep.subr.bf16.mxu0 0
        %1201 = vmatpush1.bf16.xpose.msra.mxu0 0
        %1202 = vmatprep.subr.bf16.mxu0 0
        %1203 = vmatpush1.bf16.xpose.msra.mxu0 0
        %1204 = vmatprep.subr.bf16.mxu0 0
        %1205 = vmatpush1.bf16.xpose.msra.mxu0 0
        %1206 = vmatprep.subr.bf16.mxu0 0
        %1207 = vmatpush1.bf16.xpose.msra.mxu0 0
        %1208 = vmatprep.subr.bf16.mxu0 0
        %1209 = vmatpush1.bf16.xpose.msra.mxu0 0
        %1210 = vmatprep.subr.bf16.mxu0 0
        %1211 = vmatpush1.bf16.xpose.msra.mxu0 0
        %1212 = vmatprep.subr.bf16.mxu0 0
        %1213 = vmatpush1.bf16.xpose.msra.mxu0 0
        %1214 = vmatprep.subr.bf16.mxu0 0
        %1215 = vmatpush1.bf16.xpose.msra.mxu0 0
        %1216 = vmatprep.subr.bf16.mxu0 0
        %1217 = vmatpush1.bf16.xpose.msra.mxu0 0
        %1218 = vmatprep.subr.bf16.mxu0 0
        %1219 = vmatpush1.bf16.xpose.msra.mxu0 0
        %1220 = vmatprep.subr.bf16.mxu0 0
        %1221 = vmatpush1.bf16.xpose.msra.mxu0 0
        %1222 = vmatprep.mubr.bf16.mxu0 0
        %1223 = vmatmul.mubr.bf16.gmra.mrb[0].mxu0 %v1185
        %v1224 = vpop.f32.mrb[0].mxu0
        %v1225 = vadd.f32 0.0, %v1224
        %v1226 = vpop.f32.mrb[0].mxu0
        %v1227 = vpop.f32.mrb[0].mxu0
        %v1228 = vpop.f32.mrb[0].mxu0
        %1229 = vdwg.mxu0
        %v1230 = vmul.f32 %v1225, 0.35355338
        %v1231 = vsel %vm693, %v1230, -inf
        %1232 = vmax.xlane.f32.xlu0 %v1231
        %v1233 = vpop.xlane.xlu0 %1232
        %v1234 = vsub.f32 %v1230, %v1233
        %v1235 = vmul.f32 %v1234, 1.442695
        %v1236 = vpow.pop %v1235
        %v1237 = vsel %vm693, %v1236, 0.0
        %1238 = vadd.xlane.f32.xlu0 %v1237
        %v1239 = vpop.xlane.xlu0 %1238
        %v1240 = vrcp.pop %v1239
        %v1241 = vmul.f32 %v1236, %v1240
        %v1242 = vpack.c.bf16 %v1241, %v1241
        %1243 = vrot.lane.b32.xlu0 %v692, 104
        %v1244 = vpop.permute.xlu0 %1243
        %v1246 = vsel %vm693, %v1242, 0
        %v1249 = vsel %vm756, %v1244, 0
        %1251 = vmatprep.subr.bf16.mxu0 0
        %1252 = vmatpush1.bf16.msra.mxu0 %v1249
        %1253 = vmatprep.subr.bf16.mxu0 0
        %1254 = vmatpush1.bf16.msra.mxu0 0
        %1255 = vmatprep.subr.bf16.mxu0 0
        %1256 = vmatpush1.bf16.msra.mxu0 0
        %1257 = vmatprep.subr.bf16.mxu0 0
        %1258 = vmatpush1.bf16.msra.mxu0 0
        %1259 = vmatprep.subr.bf16.mxu0 0
        %1260 = vmatpush1.bf16.msra.mxu0 0
        %1261 = vmatprep.subr.bf16.mxu0 0
        %1262 = vmatpush1.bf16.msra.mxu0 0
        %1263 = vmatprep.subr.bf16.mxu0 0
        %1264 = vmatpush1.bf16.msra.mxu0 0
        %1265 = vmatprep.subr.bf16.mxu0 0
        %1266 = vmatpush1.bf16.msra.mxu0 0
        %1267 = vmatprep.subr.bf16.mxu0 0
        %1268 = vmatpush1.bf16.msra.mxu0 0
        %1269 = vmatprep.subr.bf16.mxu0 0
        %1270 = vmatpush1.bf16.msra.mxu0 0
        %1271 = vmatprep.subr.bf16.mxu0 0
        %1272 = vmatpush1.bf16.msra.mxu0 0
        %1273 = vmatprep.subr.bf16.mxu0 0
        %1274 = vmatpush1.bf16.msra.mxu0 0
        %1275 = vmatprep.subr.bf16.mxu0 0
        %1276 = vmatpush1.bf16.msra.mxu0 0
        %1277 = vmatprep.subr.bf16.mxu0 0
        %1278 = vmatpush1.bf16.msra.mxu0 0
        %1279 = vmatprep.subr.bf16.mxu0 0
        %1280 = vmatpush1.bf16.msra.mxu0 0
        %1281 = vmatprep.subr.bf16.mxu0 0
        %1282 = vmatpush1.bf16.msra.mxu0 0
        %1283 = vmatprep.mubr.bf16.mxu0 0
        %1284 = vmatmul.mubr.bf16.gmra.mrb[0].mxu0 %v1246
        %v1285 = vpop.f32.mrb[0].mxu0
        %v1286 = vadd.f32 0.0, %v1285
        %v1287 = vpop.f32.mrb[0].mxu0
        %v1288 = vpop.f32.mrb[0].mxu0
        %v1289 = vpop.f32.mrb[0].mxu0
        %1290 = vdwg.mxu0
        %v1291 = vpack.c.bf16 %v1286, %v1286
        %s1292 = scalar_lea.vmem %s482, 12
        %v1293 = vld [vmem:[%s1292] sm:$0xf]
        %v1295 = vsel %vm693, %v1291, 0
        %v1298 = vsel %vm756, %v1293, 0
        %1300 = vmatprep.subr.bf16.mxu0 0
        %1301 = vmatpush1.bf16.msra.mxu0 %v1298
        %1302 = vmatprep.subr.bf16.mxu0 0
        %1303 = vmatpush1.bf16.msra.mxu0 0
        %1304 = vmatprep.subr.bf16.mxu0 0
        %1305 = vmatpush1.bf16.msra.mxu0 0
        %1306 = vmatprep.subr.bf16.mxu0 0
        %1307 = vmatpush1.bf16.msra.mxu0 0
        %1308 = vmatprep.subr.bf16.mxu0 0
        %1309 = vmatpush1.bf16.msra.mxu0 0
        %1310 = vmatprep.subr.bf16.mxu0 0
        %1311 = vmatpush1.bf16.msra.mxu0 0
        %1312 = vmatprep.subr.bf16.mxu0 0
        %1313 = vmatpush1.bf16.msra.mxu0 0
        %1314 = vmatprep.subr.bf16.mxu0 0
        %1315 = vmatpush1.bf16.msra.mxu0 0
        %1316 = vmatprep.subr.bf16.mxu0 0
        %1317 = vmatpush1.bf16.msra.mxu0 0
        %1318 = vmatprep.subr.bf16.mxu0 0
        %1319 = vmatpush1.bf16.msra.mxu0 0
        %1320 = vmatprep.subr.bf16.mxu0 0
        %1321 = vmatpush1.bf16.msra.mxu0 0
        %1322 = vmatprep.subr.bf16.mxu0 0
        %1323 = vmatpush1.bf16.msra.mxu0 0
        %1324 = vmatprep.subr.bf16.mxu0 0
        %1325 = vmatpush1.bf16.msra.mxu0 0
        %1326 = vmatprep.subr.bf16.mxu0 0
        %1327 = vmatpush1.bf16.msra.mxu0 0
        %1328 = vmatprep.subr.bf16.mxu0 0
        %1329 = vmatpush1.bf16.msra.mxu0 0
        %1330 = vmatprep.subr.bf16.mxu0 0
        %1331 = vmatpush1.bf16.msra.mxu0 0
        %1332 = vmatprep.mubr.bf16.mxu0 0
        %1333 = vmatmul.mubr.bf16.gmra.mrb[0].mxu0 %v1295
        %v1334 = vpop.f32.mrb[0].mxu0
        %v1335 = vadd.f32 0.0, %v1334
        %v1336 = vpop.f32.mrb[0].mxu0
        %v1337 = vpop.f32.mrb[0].mxu0
        %v1338 = vpop.f32.mrb[0].mxu0
        %1339 = vdwg.mxu0
        %v1340 = vld [vmem:[#allocation2] sm:$0xff]
        %v1341 = vadd.f32 %v1340, %v1335
        %1342 = vst.msk [vmem:[#allocation2] sm:$0xff] %vm525, %v1341
        %v1343 = vld [vmem:[#allocation2] sm:$0xff]
        %v1344 = vlaneseq
        %v1345 = vshrl.u32 %v1344, 7
        %v1346 = vsub.s32 3, %v1345
        %v1347 = vrot.slane %v503, %v1346
        %v1348 = vadd.f32 %v1343, %v1347
        %v1349 = vadd.f32 %v501, %v1348
        %v1350 = vsel %vm525, %v1349, 0.0
        %1351 = vadd.xlane.f32.xlu0 %v1350
        %v1352 = vpop.xlane.xlu0 %1351
        %v1353 = vrcp.pop 32.0
        %v1354 = vmul.f32 %v1352, %v1353
        %v1355 = vmul.f32 %v1349, %v1349
        %v1356 = vsel %vm525, %v1355, 0.0
        %1357 = vadd.xlane.f32.xlu0 %v1356
        %v1358 = vpop.xlane.xlu0 %1357
        %v1359 = vmul.f32 %v1358, %v1353
        %v1360 = vmul.f32 %v1354, %v1354
        %v1361 = vsub.f32 %v1359, %v1360
        %v1362 = vsub.f32 %v1349, %v1354
        %v1363 = vadd.f32 %v1361, 1e-05
        %v1364 = vrsqrt.pop %v1363
        %v1365 = vmul.f32 %v1362, %v1364
        %v1366 = vlaneseq
        %v1367 = vshrl.u32 %v1366, 7
        %v1368 = vsub.s32 6, %v1367
        %v1369 = vrot.slane %v503, %v1368
        %v1370 = vmul.f32 %v1365, %v1369
        %v1371 = vlaneseq
        %v1372 = vshrl.u32 %v1371, 7
        %v1373 = vsub.s32 7, %v1372
        %v1374 = vrot.slane %v503, %v1373
        %v1375 = vadd.f32 %v1370, %v1374
        %v1376 = vpack.c.bf16 %v1375, %v1375
        %v1377 = vld [vmem:[%s395] sm:$0xf]
        %v1378 = vld [vmem:[%s395 + $0x4] sm:$0xf]
        %v1379 = vld [vmem:[%s395 + $0x8] sm:$0xf]
        %v1380 = vld [vmem:[%s395 + $0xc] sm:$0xf]
        %v1381 = vlaneseq
        %v1382 = vshrl.u32 %v1381, 7
        %v1383 = vsub.s32 4, %v1382
        %v1384 = vrot.slane %v503, %v1383
        %v1389 = vunpack.c.l.b16 %v1377
        %v1390 = vunpack.c.l.b16 %v1378
        %v1391 = vunpack.c.l.b16 %v1379
        %v1392 = vunpack.c.l.b16 %v1380
        %v1393 = vpack.c.b16 %v1390, %v1389
        %v1394 = vpack.c.b16 %v1392, %v1391
        %v1398 = vsel %vm525, %v1376, 0
        %1400 = vmatprep.subr.bf16.mxu0 0
        %1401 = vmatpush1.bf16.msra.mxu0 %v1393
        %1402 = vmatprep.subr.bf16.mxu0 0
        %1403 = vmatpush1.bf16.msra.mxu0 %v1394
        %1404 = vmatprep.subr.bf16.mxu0 0
        %1405 = vmatpush1.bf16.msra.mxu0 0
        %1406 = vmatprep.subr.bf16.mxu0 0
        %1407 = vmatpush1.bf16.msra.mxu0 0
        %1408 = vmatprep.subr.bf16.mxu0 0
        %1409 = vmatpush1.bf16.msra.mxu0 0
        %1410 = vmatprep.subr.bf16.mxu0 0
        %1411 = vmatpush1.bf16.msra.mxu0 0
        %1412 = vmatprep.subr.bf16.mxu0 0
        %1413 = vmatpush1.bf16.msra.mxu0 0
        %1414 = vmatprep.subr.bf16.mxu0 0
        %1415 = vmatpush1.bf16.msra.mxu0 0
        %1416 = vmatprep.subr.bf16.mxu0 0
        %1417 = vmatpush1.bf16.msra.mxu0 0
        %1418 = vmatprep.subr.bf16.mxu0 0
        %1419 = vmatpush1.bf16.msra.mxu0 0
        %1420 = vmatprep.subr.bf16.mxu0 0
        %1421 = vmatpush1.bf16.msra.mxu0 0
        %1422 = vmatprep.subr.bf16.mxu0 0
        %1423 = vmatpush1.bf16.msra.mxu0 0
        %1424 = vmatprep.subr.bf16.mxu0 0
        %1425 = vmatpush1.bf16.msra.mxu0 0
        %1426 = vmatprep.subr.bf16.mxu0 0
        %1427 = vmatpush1.bf16.msra.mxu0 0
        %1428 = vmatprep.subr.bf16.mxu0 0
        %1429 = vmatpush1.bf16.msra.mxu0 0
        %1430 = vmatprep.subr.bf16.mxu0 0
        %1431 = vmatpush1.bf16.msra.mxu0 0
        %1432 = vmatprep.mubr.bf16.mxu0 0
        %1433 = vmatmul.mubr.bf16.gmra.mrb[0].mxu0 %v1398
        %v1434 = vpop.f32.mrb[0].mxu0
        %v1435 = vadd.f32 %v1384, %v1434
        %v1436 = vpop.f32.mrb[0].mxu0
        %v1437 = vpop.f32.mrb[0].mxu0
        %v1438 = vpop.f32.mrb[0].mxu0
        %1439 = vdwg.mxu0
        %v1440 = vmax.f32 %v1435, 0.0
        %v1441 = vpack.c.bf16 %v1440, %v1440
        %v1442 = vld [vmem:[%s487] sm:$0xf]
        %v1443 = vld [vmem:[%s487 + $0x4] sm:$0xf]
        %v1444 = vld [vmem:[%s487 + $0x8] sm:$0xf]
        %v1445 = vld [vmem:[%s487 + $0xc] sm:$0xf]
        %v1446 = vld [vmem:[%s487 + $0x10] sm:$0xf]
        %v1447 = vld [vmem:[%s487 + $0x14] sm:$0xf]
        %v1448 = vld [vmem:[%s487 + $0x18] sm:$0xf]
        %v1449 = vld [vmem:[%s487 + $0x1c] sm:$0xf]
        %v1450 = vlaneseq
        %v1451 = vshrl.u32 %v1450, 7
        %v1452 = vsub.s32 5, %v1451
        %v1453 = vrot.slane %v503, %v1452
        %v1462 = vunpack.c.l.b16 %v1442
        %v1463 = vunpack.c.l.b16 %v1443
        %v1464 = vunpack.c.l.b16 %v1444
        %v1465 = vunpack.c.l.b16 %v1445
        %v1466 = vunpack.c.l.b16 %v1446
        %v1467 = vunpack.c.l.b16 %v1447
        %v1468 = vunpack.c.l.b16 %v1448
        %v1469 = vunpack.c.l.b16 %v1449
        %v1470 = vpack.c.b16 %v1463, %v1462
        %v1471 = vpack.c.b16 %v1465, %v1464
        %v1472 = vpack.c.b16 %v1467, %v1466
        %v1473 = vpack.c.b16 %v1469, %v1468
        %vm1478 = vcmask 523264
        %v1480 = vsel %vm1478, %v1441, 0
        %1482 = vmatprep.subr.bf16.mxu0 0
        %1483 = vmatpush1.bf16.msra.mxu0 %v1470
        %1484 = vmatprep.subr.bf16.mxu0 0
        %1485 = vmatpush1.bf16.msra.mxu0 %v1471
        %1486 = vmatprep.subr.bf16.mxu0 0
        %1487 = vmatpush1.bf16.msra.mxu0 %v1472
        %1488 = vmatprep.subr.bf16.mxu0 0
        %1489 = vmatpush1.bf16.msra.mxu0 %v1473
        %1490 = vmatprep.subr.bf16.mxu0 0
        %1491 = vmatpush1.bf16.msra.mxu0 0
        %1492 = vmatprep.subr.bf16.mxu0 0
        %1493 = vmatpush1.bf16.msra.mxu0 0
        %1494 = vmatprep.subr.bf16.mxu0 0
        %1495 = vmatpush1.bf16.msra.mxu0 0
        %1496 = vmatprep.subr.bf16.mxu0 0
        %1497 = vmatpush1.bf16.msra.mxu0 0
        %1498 = vmatprep.subr.bf16.mxu0 0
        %1499 = vmatpush1.bf16.msra.mxu0 0
        %1500 = vmatprep.subr.bf16.mxu0 0
        %1501 = vmatpush1.bf16.msra.mxu0 0
        %1502 = vmatprep.subr.bf16.mxu0 0
        %1503 = vmatpush1.bf16.msra.mxu0 0
        %1504 = vmatprep.subr.bf16.mxu0 0
        %1505 = vmatpush1.bf16.msra.mxu0 0
        %1506 = vmatprep.subr.bf16.mxu0 0
        %1507 = vmatpush1.bf16.msra.mxu0 0
        %1508 = vmatprep.subr.bf16.mxu0 0
        %1509 = vmatpush1.bf16.msra.mxu0 0
        %1510 = vmatprep.subr.bf16.mxu0 0
        %1511 = vmatpush1.bf16.msra.mxu0 0
        %1512 = vmatprep.subr.bf16.mxu0 0
        %1513 = vmatpush1.bf16.msra.mxu0 0
        %1514 = vmatprep.mubr.bf16.mxu0 0
        %1515 = vmatmul.mubr.bf16.gmra.mrb[0].mxu0 %v1480
        %v1516 = vpop.f32.mrb[0].mxu0
        %v1517 = vadd.f32 %v1453, %v1516
        %v1518 = vpop.f32.mrb[0].mxu0
        %v1519 = vpop.f32.mrb[0].mxu0
        %v1520 = vpop.f32.mrb[0].mxu0
        %1521 = vdwg.mxu0
        %v1522 = vadd.f32 %v1375, %v1517
        %v1523 = vsel %vm525, %v1522, 0.0
        %1524 = vadd.xlane.f32.xlu0 %v1523
        %v1525 = vpop.xlane.xlu0 %1524
        %v1526 = vmul.f32 %v1525, %v1353
        %v1527 = vmul.f32 %v1522, %v1522
        %v1528 = vsel %vm525, %v1527, 0.0
        %1529 = vadd.xlane.f32.xlu0 %v1528
        %v1530 = vpop.xlane.xlu0 %1529
        %v1531 = vmul.f32 %v1530, %v1353
        %v1532 = vmul.f32 %v1526, %v1526
        %v1533 = vsub.f32 %v1531, %v1532
        %v1534 = vsub.f32 %v1522, %v1526
        %v1535 = vadd.f32 %v1533, 1e-05
        %v1536 = vrsqrt.pop %v1535
        %v1537 = vmul.f32 %v1534, %v1536
        %v1538 = vlaneseq
        %v1539 = vshrl.u32 %v1538, 7
        %v1540 = vsub.s32 0, %v1539
        %v1541 = vrot.slane %v504, %v1540
        %v1542 = vmul.f32 %v1537, %v1541
        %v1543 = vlaneseq
        %v1544 = vshrl.u32 %v1543, 7
        %v1545 = vsub.s32 1, %v1544
        %v1546 = vrot.slane %v504, %v1545
        %v1547 = vadd.f32 %v1542, %v1546
        %1548 = vst.msk [vmem:[%s462] sm:$0xff] %vm525, %v1547
        %s1549 = sand.u32 %s256, 1
        %s1550 = scalar_lea.sflag [#allocation5], %s1549
        %s1551 = sand.u32 %s256, 1
        %s1552 = smul.addr %s1551, 8
        %s1553 = scalar_lea.vmem [#allocation8], %s1552
        // Predicated region
        $region65: #{tpu_custom_call.1} parent=51 // pred_check
          %p1554 = pneg %p266
        $region66: #{tpu_custom_call.1} parent=51 // pred_check_branch
          %1556 = sbr.rel (%p1554) target = $region68
        $region67: #{tpu_custom_call.1} parent=51 // pred_region
          %s1558 = ssub.s32 128, 128
          %1559 = vsyncadd %s1550, %s1558
          %s1560 = smul.addr %s32, 128
          %s1561 = scalar_lea.hbm %s8, %s1560
          %s1563 = sshll.u32 %s1553, 4
          %s1564 = int_to_ptr.vmem [resolvable:$true] %s1563
          %1566 = dma.vmem_to_hbm [thread:$0]  %s1564, 128, %s1561, %s1550
        $region68: #{tpu_custom_call.1} parent=51 // pred_fallthru
          _
      $region52: #{tpu_custom_call.1} parent=5 // pred_fallthru
        _
      %p1567 = scmp.le.s32.totalorder 2, %s23
      // Predicated region
      $region69: #{tpu_custom_call.1} parent=5 // pred_check
        %p1568 = pneg %p1567
      $region70: #{tpu_custom_call.1} parent=5 // pred_check_branch
        %1570 = sbr.rel (%p1568) target = $region72
      $region71: #{tpu_custom_call.1} parent=5 // pred_region
        %s1571 = ssub.s32 %s23, 2
        // Predicated region
        $region73: #{tpu_custom_call.1} parent=71 // pred_check
          %p1572 = pneg %p272
        $region74: #{tpu_custom_call.1} parent=71 // pred_check_branch
          %1574 = sbr.rel (%p1572) target = $region76
        $region75: #{tpu_custom_call.1} parent=71 // pred_region
          %s1575 = sand.u32 %s257, 1
          %s1576 = scalar_lea.sflag [#allocation5], %s1575
          %s1577 = sand.u32 %s257, 1
          %s1578 = smul.addr %s1577, 8
          %s1579 = scalar_lea.vmem [#allocation8], %s1578
          %1580 = dma.done %s1576, 128
        $region76: #{tpu_custom_call.1} parent=71 // pred_fallthru
          _
      $region72: #{tpu_custom_call.1} parent=5 // pred_fallthru
        _
    $region6: #{tpu_custom_call.1} parent=1 // loop_footer
      %s27 = sadd.s32 1, %s23
    $region7: #{tpu_custom_call.1} parent=1 // loop_footer_branch
      %22 = sbr.rel target = $region3
    $region8: #{tpu_custom_call.1} parent=1 // loop_exit
      _
    %1581 = vsyncpa [#allocation4], 1
    %s1582 = scalar_lea.sflag [#allocation4], 1
    %1583 = vsyncpa %s1582, 1
    %1584 = vsyncpa [#allocation7], 1
    %s1585 = scalar_lea.sflag [#allocation7], 1
    %1586 = vsyncpa %s1585, 1
    %1587 = vsyncpa [#allocation5], 1
    %s1588 = scalar_lea.sflag [#allocation5], 1
    %1589 = vsyncpa %s1588, 1

</llo_original>
